<compile_context>
chip_gen: v7x
topology: tpu7x:2x2x1
jax: 0.10.0
libtpu: 0.0.40
codegen_flags: <defaults>
</compile_context>

<pallas_src>
import jax
import jax.numpy as jnp
from jax.experimental import pallas as pl
from jax.experimental.pallas import tpu as pltpu


_HAS_STATEFUL_NORMAL = hasattr(pltpu, "stateful_normal")


def _accumulate_conv(acc, x, w):
    """acc (C_out,S) += W (C_out,C_in) @ x (C_in,S), unrolled on the VPU."""
    c_in = x.shape[0]
    for ci in range(c_in):                                # K=4: static unroll
        acc = acc + w[:, ci:ci + 1] * x[ci:ci + 1, :]     # (C_out,1)*(1,S)
    return acc


def conv1x1_add_rng_kernel(seed_ref, x_ref, w_ref, b_ref, o_ref, other_ref):
    """One batch element: x (C_in,S) -> o, other (C_out,S); S lane-dense."""
    n = pl.program_id(0)
    pltpu.prng_seed(seed_ref[n])                  # independent noise per batch
    c_out, s = o_ref.shape
    other = pltpu.stateful_normal((c_out, s), jnp.float32)
    other_ref[...] = other                        # write-only, returned to host
    acc = other + b_ref[...]                      # bias folded into acc init
    o_ref[...] = _accumulate_conv(acc, x_ref[...], w_ref[...])


def conv1x1_add_hostrng_kernel(x_ref, w_ref, b_ref, other_ref, o_ref):
    """Fallback: `other` supplied from the host (same lane-dense layout)."""
    acc = other_ref[...] + b_ref[...]
    o_ref[...] = _accumulate_conv(acc, x_ref[...], w_ref[...])


def _specs(c_in, c_out, s):
    x_spec = pl.BlockSpec((None, c_in, s), lambda i, *_: (i, 0, 0))
    w_spec = pl.BlockSpec((c_out, c_in), lambda i, *_: (0, 0))
    b_spec = pl.BlockSpec((c_out, 1), lambda i, *_: (0, 0))
    o_spec = pl.BlockSpec((None, c_out, s), lambda i, *_: (i, 0, 0))
    return x_spec, w_spec, b_spec, o_spec


def _forward_rng_in_kernel(x_flat, w2d, b2d, noise_seed):
    n, c_in, s = x_flat.shape
    c_out = w2d.shape[0]
    x_spec, w_spec, b_spec, o_spec = _specs(c_in, c_out, s)
    seeds = jnp.int32(noise_seed) + jnp.arange(n, dtype=jnp.int32)
    out_flat, other_flat = pl.pallas_call(
        conv1x1_add_rng_kernel,
        out_shape=(jax.ShapeDtypeStruct((n, c_out, s), jnp.float32),
                   jax.ShapeDtypeStruct((n, c_out, s), jnp.float32)),
        grid_spec=pltpu.PrefetchScalarGridSpec(
            num_scalar_prefetch=1,
            grid=(n,),
            in_specs=[x_spec, w_spec, b_spec],
            out_specs=(o_spec, o_spec)),
        compiler_params=pltpu.CompilerParams(
            dimension_semantics=("parallel",)),
    )(seeds, x_flat, w2d, b2d)
    return out_flat, other_flat


def _forward_host_rng(x_flat, w2d, b2d, noise_seed):
    # TODO(synk): used only if pltpu.stateful_normal is unavailable; `other` is
    # then materialized on the host (still channels-first / lane-dense).
    n, c_in, s = x_flat.shape
    c_out = w2d.shape[0]
    x_spec, w_spec, b_spec, o_spec = _specs(c_in, c_out, s)
    other_flat = jax.random.normal(jax.random.PRNGKey(noise_seed),
                                   (n, c_out, s), dtype=jnp.float32)
    out_flat = pl.pallas_call(
        conv1x1_add_hostrng_kernel,
        out_shape=jax.ShapeDtypeStruct((n, c_out, s), jnp.float32),
        grid_spec=pltpu.PrefetchScalarGridSpec(
            num_scalar_prefetch=0,
            grid=(n,),
            in_specs=[x_spec, w_spec, b_spec, o_spec],
            out_specs=o_spec),
        compiler_params=pltpu.CompilerParams(
            dimension_semantics=("parallel",)),
    )(x_flat, w2d, b2d, other_flat)
    return out_flat, other_flat


def model_forward(x_nchw, weight, bias, noise_seed=0):
    """Replicates Model.forward(x1, other=False): Conv2d(4,8,1,padding=1)+randn."""
    n, c_in, h, w = x_nchw.shape
    c_out = weight.shape[0]
    hp, wp = h + 2, w + 2                     # padding=1, kernel=1, stride=1
    s = hp * wp

    # Channels-first all the way: one cheap spatial zero-pad of the 4-channel
    # input plus free (contiguous) reshapes.  No transposes.
    x_flat = jnp.pad(x_nchw, ((0, 0), (0, 0), (1, 1), (1, 1))).reshape(n, c_in, s)
    w2d = weight.reshape(c_out, c_in)         # (8, 4)
    b2d = bias.reshape(c_out, 1)              # (8, 1), broadcasts over lanes

    if _HAS_STATEFUL_NORMAL:
        try:
            out_flat, other_flat = _forward_rng_in_kernel(x_flat, w2d, b2d,
                                                          noise_seed)
            out_flat = jax.block_until_ready(out_flat)
        except Exception:
            out_flat, other_flat = _forward_host_rng(x_flat, w2d, b2d,
                                                     noise_seed)
    else:
        out_flat, other_flat = _forward_host_rng(x_flat, w2d, b2d, noise_seed)

    out = out_flat.reshape(n, c_out, hp, wp)      # already NCHW -> free reshape
    other = other_flat.reshape(n, c_out, hp, wp)
    return out, other


if __name__ == "__main__":
    key = jax.random.PRNGKey(0)
    k_x, k_w, k_b = jax.random.split(key, 3)

    # Small shapes consistent with the module: N=2, C_in=4, H=W=16.
    N, C_IN, H, W = 2, 4, 16, 16
    C_OUT = 8

    x1 = jax.random.normal(k_x, (N, C_IN, H, W), dtype=jnp.float32)
    # Deterministic Conv2d(4, 8, 1) parameters (synthetic init, not a checkpoint).
    weight = jax.random.normal(k_w, (C_OUT, C_IN, 1, 1), dtype=jnp.float32) * 0.1
    bias = jax.random.normal(k_b, (C_OUT,), dtype=jnp.float32) * 0.1

    out, other = model_forward(x1, weight, bias, noise_seed=1234)
    out = jax.block_until_ready(out)

    # Reference: plain-JAX 1x1 conv (padding=1) + bias + the noise the kernel used.
    x_pad = jnp.pad(x1, ((0, 0), (0, 0), (1, 1), (1, 1)))
    conv = jnp.einsum("oc,nchw->nohw", weight.reshape(C_OUT, C_IN), x_pad)
    ref = conv + bias.reshape(1, C_OUT, 1, 1) + other

    assert out.shape == (N, C_OUT, H + 2, W + 2), out.shape
    assert jnp.allclose(out, ref, atol=1e-5, rtol=1e-5)
    # `other` should look like standard-normal noise (loose i.i.d. sanity bounds).
    assert jnp.abs(jnp.mean(other)) < 0.2
    assert 0.7 < jnp.std(other) < 1.4

    print("KERNEL_OK")
</pallas_src>

<mosaic_0001>
module attributes {stable_mosaic.version = 11 : i64} {
  func.func @conv1x1_add_rng_kernel(%arg0: i32, %arg1: memref<2xi32, #tpu.memory_space<smem>>, %arg2: memref<1x4x324xf32, #tpu.memory_space<vmem>>, %arg3: memref<8x4xf32, #tpu.memory_space<vmem>>, %arg4: memref<8x1xf32, #tpu.memory_space<vmem>>, %arg5: memref<1x8x324xf32, #tpu.memory_space<vmem>>, %arg6: memref<1x8x324xf32, #tpu.memory_space<vmem>>) attributes {dimension_semantics = [#tpu.dimension_semantics<parallel>], iteration_bounds = array<i64: 2>, scalar_prefetch = 1 : i64, scratch_operands = 0 : i64, tpu.core_type = #tpu.core_type<tc>, window_params = [{transform_indices = @transform_0, window_bounds = array<i64: 1, 4, 324>}, {pipeline_mode = #tpu.pipeline_mode<synchronous>, transform_indices = @transform_1, window_bounds = array<i64: 8, 4>}, {pipeline_mode = #tpu.pipeline_mode<synchronous>, transform_indices = @transform_2, window_bounds = array<i64: 8, 1>}, {transform_indices = @transform_3, window_bounds = array<i64: 1, 8, 324>}, {transform_indices = @transform_4, window_bounds = array<i64: 1, 8, 324>}]} {
    %0 = arith.index_cast %arg0 : i32 to index
    %1 = memref.load %arg1[%0] : memref<2xi32, #tpu.memory_space<smem>>
    "tpu.prng_set_seed_32"(%1) : (i32) -> ()
    %c0_i32 = arith.constant 0 : i32
    %c0_i32_0 = arith.constant 0 : i32
    %cst = arith.constant -0.99999994 : f32
    %cst_1 = arith.constant 1.000000e+00 : f32
    %2 = vector.broadcast %cst : f32 to vector<1x1xf32>
    %3 = vector.broadcast %cst_1 : f32 to vector<1x1xf32>
    %4 = "tpu.prng_random_bits"() : () -> vector<8x324xi32>
    %c9_i32 = arith.constant 9 : i32
    %5 = vector.broadcast %c9_i32 : i32 to vector<8x324xi32>
    %6 = arith.shrui %4, %5 : vector<8x324xi32>
    %c1065353216_i32 = arith.constant 1065353216 : i32
    %7 = vector.broadcast %c1065353216_i32 : i32 to vector<8x324xi32>
    %8 = arith.ori %6, %7 : vector<8x324xi32>
    %9 = tpu.bitcast %8 : vector<8x324xi32> -> vector<8x324xf32>
    %cst_2 = arith.constant 1.000000e+00 : f32
    %10 = vector.broadcast %cst_2 : f32 to vector<8x324xf32>
    %11 = arith.subf %9, %10 : vector<8x324xf32>
    %12 = arith.subf %3, %2 : vector<1x1xf32>
    %13 = vector.broadcast %12 : vector<1x1xf32> to vector<8x324xf32>
    %14 = arith.mulf %11, %13 : vector<8x324xf32>
    %15 = vector.broadcast %2 : vector<1x1xf32> to vector<8x324xf32>
    %16 = arith.addf %14, %15 : vector<8x324xf32>
    %17 = vector.broadcast %2 : vector<1x1xf32> to vector<8x324xf32>
    %18 = arith.maximumf %17, %16 : vector<8x324xf32>
    %cst_3 = arith.constant 0.000000e+00 : f32
    %19 = vector.broadcast %cst_3 : f32 to vector<8x324xf32>
    %20 = arith.subf %19, %18 : vector<8x324xf32>
    %21 = arith.mulf %18, %20 : vector<8x324xf32>
    %22 = math.log1p %21 : vector<8x324xf32>
    %cst_4 = arith.constant 0.000000e+00 : f32
    %23 = vector.broadcast %cst_4 : f32 to vector<8x324xf32>
    %24 = arith.subf %23, %22 : vector<8x324xf32>
    %cst_5 = arith.constant 5.000000e+00 : f32
    %25 = vector.broadcast %cst_5 : f32 to vector<8x324xf32>
    %26 = arith.cmpf olt, %24, %25 : vector<8x324xf32>
    %cst_6 = arith.constant 2.500000e+00 : f32
    %27 = vector.broadcast %cst_6 : f32 to vector<8x324xf32>
    %28 = arith.subf %24, %27 : vector<8x324xf32>
    %29 = math.sqrt %24 : vector<8x324xf32>
    %cst_7 = arith.constant 3.000000e+00 : f32
    %30 = vector.broadcast %cst_7 : f32 to vector<8x324xf32>
    %31 = arith.subf %29, %30 : vector<8x324xf32>
    %32 = arith.select %26, %28, %31 : vector<8x324xi1>, vector<8x324xf32>
    %cst_8 = arith.constant 2.81022636E-8 : f32
    %cst_9 = arith.constant -2.00214257E-4 : f32
    %33 = vector.broadcast %cst_8 : f32 to vector<8x324xf32>
    %34 = vector.broadcast %cst_9 : f32 to vector<8x324xf32>
    %35 = arith.select %26, %33, %34 : vector<8x324xi1>, vector<8x324xf32>
    %cst_10 = arith.constant 3.43273939E-7 : f32
    %cst_11 = arith.constant 1.00950558E-4 : f32
    %36 = vector.broadcast %cst_10 : f32 to vector<8x324xf32>
    %37 = vector.broadcast %cst_11 : f32 to vector<8x324xf32>
    %38 = arith.select %26, %36, %37 : vector<8x324xi1>, vector<8x324xf32>
    %39 = arith.mulf %35, %32 : vector<8x324xf32>
    %40 = arith.addf %38, %39 : vector<8x324xf32>
    %cst_12 = arith.constant -3.5233877E-6 : f32
    %cst_13 = arith.constant 0.00134934322 : f32
    %41 = vector.broadcast %cst_12 : f32 to vector<8x324xf32>
    %42 = vector.broadcast %cst_13 : f32 to vector<8x324xf32>
    %43 = arith.select %26, %41, %42 : vector<8x324xi1>, vector<8x324xf32>
    %44 = arith.mulf %40, %32 : vector<8x324xf32>
    %45 = arith.addf %43, %44 : vector<8x324xf32>
    %cst_14 = arith.constant -4.39150654E-6 : f32
    %cst_15 = arith.constant -0.00367342844 : f32
    %46 = vector.broadcast %cst_14 : f32 to vector<8x324xf32>
    %47 = vector.broadcast %cst_15 : f32 to vector<8x324xf32>
    %48 = arith.select %26, %46, %47 : vector<8x324xi1>, vector<8x324xf32>
    %49 = arith.mulf %45, %32 : vector<8x324xf32>
    %50 = arith.addf %48, %49 : vector<8x324xf32>
    %cst_16 = arith.constant 2.1858087E-4 : f32
    %cst_17 = arith.constant 0.00573950773 : f32
    %51 = vector.broadcast %cst_16 : f32 to vector<8x324xf32>
    %52 = vector.broadcast %cst_17 : f32 to vector<8x324xf32>
    %53 = arith.select %26, %51, %52 : vector<8x324xi1>, vector<8x324xf32>
    %54 = arith.mulf %50, %32 : vector<8x324xf32>
    %55 = arith.addf %53, %54 : vector<8x324xf32>
    %cst_18 = arith.constant -0.00125372503 : f32
    %cst_19 = arith.constant -0.0076224613 : f32
    %56 = vector.broadcast %cst_18 : f32 to vector<8x324xf32>
    %57 = vector.broadcast %cst_19 : f32 to vector<8x324xf32>
    %58 = arith.select %26, %56, %57 : vector<8x324xi1>, vector<8x324xf32>
    %59 = arith.mulf %55, %32 : vector<8x324xf32>
    %60 = arith.addf %58, %59 : vector<8x324xf32>
    %cst_20 = arith.constant -0.00417768164 : f32
    %cst_21 = arith.constant 0.00943887047 : f32
    %61 = vector.broadcast %cst_20 : f32 to vector<8x324xf32>
    %62 = vector.broadcast %cst_21 : f32 to vector<8x324xf32>
    %63 = arith.select %26, %61, %62 : vector<8x324xi1>, vector<8x324xf32>
    %64 = arith.mulf %60, %32 : vector<8x324xf32>
    %65 = arith.addf %63, %64 : vector<8x324xf32>
    %cst_22 = arith.constant 0.246640727 : f32
    %cst_23 = arith.constant 1.00167406 : f32
    %66 = vector.broadcast %cst_22 : f32 to vector<8x324xf32>
    %67 = vector.broadcast %cst_23 : f32 to vector<8x324xf32>
    %68 = arith.select %26, %66, %67 : vector<8x324xi1>, vector<8x324xf32>
    %69 = arith.mulf %65, %32 : vector<8x324xf32>
    %70 = arith.addf %68, %69 : vector<8x324xf32>
    %cst_24 = arith.constant 1.50140941 : f32
    %cst_25 = arith.constant 2.83297682 : f32
    %71 = vector.broadcast %cst_24 : f32 to vector<8x324xf32>
    %72 = vector.broadcast %cst_25 : f32 to vector<8x324xf32>
    %73 = arith.select %26, %71, %72 : vector<8x324xi1>, vector<8x324xf32>
    %74 = arith.mulf %70, %32 : vector<8x324xf32>
    %75 = arith.addf %73, %74 : vector<8x324xf32>
    %76 = math.absf %18 : vector<8x324xf32>
    %cst_26 = arith.constant 1.000000e+00 : f32
    %77 = vector.broadcast %cst_26 : f32 to vector<8x324xf32>
    %78 = arith.cmpf oeq, %76, %77 : vector<8x324xf32>
    %cst_27 = arith.constant 0x7F800000 : f32
    %79 = vector.broadcast %cst_27 : f32 to vector<8x324xf32>
    %80 = arith.mulf %79, %18 : vector<8x324xf32>
    %81 = arith.mulf %75, %18 : vector<8x324xf32>
    %82 = arith.select %78, %80, %81 : vector<8x324xi1>, vector<8x324xf32>
    %cst_28 = arith.constant 1.41421354 : f32
    %83 = vector.broadcast %cst_28 : f32 to vector<8x324xf32>
    %84 = arith.mulf %83, %82 : vector<8x324xf32>
    %c0 = arith.constant 0 : index
    %c0_29 = arith.constant 0 : index
    %c0_30 = arith.constant 0 : index
    %85 = vector.load %arg6[%c0, %c0_29, %c0_30] : memref<1x8x324xf32, #tpu.memory_space<vmem>>, vector<1x8x324xf32>
    %86 = vector.shape_cast %85 : vector<1x8x324xf32> to vector<8x324xf32>
    %87 = vector.shape_cast %84 : vector<8x324xf32> to vector<1x8x324xf32>
    tpu.vector_store %arg6[%c0, %c0_29, %c0_30], %87 {strides = array<i32>} : memref<1x8x324xf32, #tpu.memory_space<vmem>>, vector<1x8x324xf32>,
    %c0_31 = arith.constant 0 : index
    %c0_32 = arith.constant 0 : index
    %88 = vector.load %arg4[%c0_31, %c0_32] : memref<8x1xf32, #tpu.memory_space<vmem>>, vector<8x1xf32>
    %89 = vector.broadcast %88 : vector<8x1xf32> to vector<8x324xf32>
    %90 = arith.addf %84, %89 : vector<8x324xf32>
    %c0_33 = arith.constant 0 : index
    %c0_34 = arith.constant 0 : index
    %c0_35 = arith.constant 0 : index
    %91 = vector.load %arg2[%c0_33, %c0_34, %c0_35] : memref<1x4x324xf32, #tpu.memory_space<vmem>>, vector<1x4x324xf32>
    %92 = vector.shape_cast %91 : vector<1x4x324xf32> to vector<4x324xf32>
    %c0_36 = arith.constant 0 : index
    %c0_37 = arith.constant 0 : index
    %93 = vector.load %arg3[%c0_36, %c0_37] : memref<8x4xf32, #tpu.memory_space<vmem>>, vector<8x4xf32>
    %94 = vector.extract_strided_slice %93 {offsets = [0, 0], sizes = [8, 1], strides = [1, 1]} : vector<8x4xf32> to vector<8x1xf32>
    %95 = vector.extract_strided_slice %92 {offsets = [0, 0], sizes = [1, 324], strides = [1, 1]} : vector<4x324xf32> to vector<1x324xf32>
    %96 = vector.broadcast %94 : vector<8x1xf32> to vector<8x324xf32>
    %97 = vector.broadcast %95 : vector<1x324xf32> to vector<8x324xf32>
    %98 = arith.mulf %96, %97 : vector<8x324xf32>
    %99 = arith.addf %90, %98 : vector<8x324xf32>
    %100 = vector.extract_strided_slice %93 {offsets = [0, 1], sizes = [8, 1], strides = [1, 1]} : vector<8x4xf32> to vector<8x1xf32>
    %101 = vector.extract_strided_slice %92 {offsets = [1, 0], sizes = [1, 324], strides = [1, 1]} : vector<4x324xf32> to vector<1x324xf32>
    %102 = vector.broadcast %100 : vector<8x1xf32> to vector<8x324xf32>
    %103 = vector.broadcast %101 : vector<1x324xf32> to vector<8x324xf32>
    %104 = arith.mulf %102, %103 : vector<8x324xf32>
    %105 = arith.addf %99, %104 : vector<8x324xf32>
    %106 = vector.extract_strided_slice %93 {offsets = [0, 2], sizes = [8, 1], strides = [1, 1]} : vector<8x4xf32> to vector<8x1xf32>
    %107 = vector.extract_strided_slice %92 {offsets = [2, 0], sizes = [1, 324], strides = [1, 1]} : vector<4x324xf32> to vector<1x324xf32>
    %108 = vector.broadcast %106 : vector<8x1xf32> to vector<8x324xf32>
    %109 = vector.broadcast %107 : vector<1x324xf32> to vector<8x324xf32>
    %110 = arith.mulf %108, %109 : vector<8x324xf32>
    %111 = arith.addf %105, %110 : vector<8x324xf32>
    %112 = vector.extract_strided_slice %93 {offsets = [0, 3], sizes = [8, 1], strides = [1, 1]} : vector<8x4xf32> to vector<8x1xf32>
    %113 = vector.extract_strided_slice %92 {offsets = [3, 0], sizes = [1, 324], strides = [1, 1]} : vector<4x324xf32> to vector<1x324xf32>
    %114 = vector.broadcast %112 : vector<8x1xf32> to vector<8x324xf32>
    %115 = vector.broadcast %113 : vector<1x324xf32> to vector<8x324xf32>
    %116 = arith.mulf %114, %115 : vector<8x324xf32>
    %117 = arith.addf %111, %116 : vector<8x324xf32>
    %c0_38 = arith.constant 0 : index
    %c0_39 = arith.constant 0 : index
    %c0_40 = arith.constant 0 : index
    %118 = vector.load %arg5[%c0_38, %c0_39, %c0_40] : memref<1x8x324xf32, #tpu.memory_space<vmem>>, vector<1x8x324xf32>
    %119 = vector.shape_cast %118 : vector<1x8x324xf32> to vector<8x324xf32>
    %120 = vector.shape_cast %117 : vector<8x324xf32> to vector<1x8x324xf32>
    tpu.vector_store %arg5[%c0_38, %c0_39, %c0_40], %120 {strides = array<i32>} : memref<1x8x324xf32, #tpu.memory_space<vmem>>, vector<1x8x324xf32>,
    return
  }
  func.func @transform_0(%arg0: i32, %arg1: memref<2xi32, #tpu.memory_space<smem>>) -> (i32, i32, i32) {
    %c0_i32 = arith.constant 0 : i32
    %c0_i32_0 = arith.constant 0 : i32
    %c0_i32_1 = arith.constant 0 : i32
    return %arg0, %c0_i32, %c0_i32_0 : i32, i32, i32
  }
  func.func @transform_1(%arg0: i32, %arg1: memref<2xi32, #tpu.memory_space<smem>>) -> (i32, i32) {
    %c0_i32 = arith.constant 0 : i32
    %c0_i32_0 = arith.constant 0 : i32
    %c0_i32_1 = arith.constant 0 : i32
    return %c0_i32, %c0_i32_0 : i32, i32
  }
  func.func @transform_2(%arg0: i32, %arg1: memref<2xi32, #tpu.memory_space<smem>>) -> (i32, i32) {
    %c0_i32 = arith.constant 0 : i32
    %c0_i32_0 = arith.constant 0 : i32
    %c0_i32_1 = arith.constant 0 : i32
    return %c0_i32, %c0_i32_0 : i32, i32
  }
  func.func @transform_3(%arg0: i32, %arg1: memref<2xi32, #tpu.memory_space<smem>>) -> (i32, i32, i32) {
    %c0_i32 = arith.constant 0 : i32
    %c0_i32_0 = arith.constant 0 : i32
    %c0_i32_1 = arith.constant 0 : i32
    return %arg0, %c0_i32, %c0_i32_0 : i32, i32, i32
  }
  func.func @transform_4(%arg0: i32, %arg1: memref<2xi32, #tpu.memory_space<smem>>) -> (i32, i32, i32) {
    %c0_i32 = arith.constant 0 : i32
    %c0_i32_0 = arith.constant 0 : i32
    %c0_i32_1 = arith.constant 0 : i32
    return %arg0, %c0_i32, %c0_i32_0 : i32, i32, i32
  }
}

module attributes {stable_mosaic.version = 11 : i64} {
  func.func @conv1x1_add_hostrng_kernel(%arg0: i32, %arg1: memref<1x4x324xf32, #tpu.memory_space<vmem>>, %arg2: memref<8x4xf32, #tpu.memory_space<vmem>>, %arg3: memref<8x1xf32, #tpu.memory_space<vmem>>, %arg4: memref<1x8x324xf32, #tpu.memory_space<vmem>>, %arg5: memref<1x8x324xf32, #tpu.memory_space<vmem>>) attributes {dimension_semantics = [#tpu.dimension_semantics<parallel>], iteration_bounds = array<i64: 2>, scalar_prefetch = 0 : i64, scratch_operands = 0 : i64, tpu.core_type = #tpu.core_type<tc>, window_params = [{transform_indices = @transform_0, window_bounds = array<i64: 1, 4, 324>}, {pipeline_mode = #tpu.pipeline_mode<synchronous>, transform_indices = @transform_1, window_bounds = array<i64: 8, 4>}, {pipeline_mode = #tpu.pipeline_mode<synchronous>, transform_indices = @transform_2, window_bounds = array<i64: 8, 1>}, {transform_indices = @transform_3, window_bounds = array<i64: 1, 8, 324>}, {transform_indices = @transform_4, window_bounds = array<i64: 1, 8, 324>}]} {
    %c0 = arith.constant 0 : index
    %c0_0 = arith.constant 0 : index
    %c0_1 = arith.constant 0 : index
    %0 = vector.load %arg4[%c0, %c0_0, %c0_1] : memref<1x8x324xf32, #tpu.memory_space<vmem>>, vector<1x8x324xf32>
    %1 = vector.shape_cast %0 : vector<1x8x324xf32> to vector<8x324xf32>
    %c0_2 = arith.constant 0 : index
    %c0_3 = arith.constant 0 : index
    %2 = vector.load %arg3[%c0_2, %c0_3] : memref<8x1xf32, #tpu.memory_space<vmem>>, vector<8x1xf32>
    %3 = vector.broadcast %2 : vector<8x1xf32> to vector<8x324xf32>
    %4 = arith.addf %1, %3 : vector<8x324xf32>
    %c0_4 = arith.constant 0 : index
    %c0_5 = arith.constant 0 : index
    %c0_6 = arith.constant 0 : index
    %5 = vector.load %arg1[%c0_4, %c0_5, %c0_6] : memref<1x4x324xf32, #tpu.memory_space<vmem>>, vector<1x4x324xf32>
    %6 = vector.shape_cast %5 : vector<1x4x324xf32> to vector<4x324xf32>
    %c0_7 = arith.constant 0 : index
    %c0_8 = arith.constant 0 : index
    %7 = vector.load %arg2[%c0_7, %c0_8] : memref<8x4xf32, #tpu.memory_space<vmem>>, vector<8x4xf32>
    %8 = vector.extract_strided_slice %7 {offsets = [0, 0], sizes = [8, 1], strides = [1, 1]} : vector<8x4xf32> to vector<8x1xf32>
    %9 = vector.extract_strided_slice %6 {offsets = [0, 0], sizes = [1, 324], strides = [1, 1]} : vector<4x324xf32> to vector<1x324xf32>
    %10 = vector.broadcast %8 : vector<8x1xf32> to vector<8x324xf32>
    %11 = vector.broadcast %9 : vector<1x324xf32> to vector<8x324xf32>
    %12 = arith.mulf %10, %11 : vector<8x324xf32>
    %13 = arith.addf %4, %12 : vector<8x324xf32>
    %14 = vector.extract_strided_slice %7 {offsets = [0, 1], sizes = [8, 1], strides = [1, 1]} : vector<8x4xf32> to vector<8x1xf32>
    %15 = vector.extract_strided_slice %6 {offsets = [1, 0], sizes = [1, 324], strides = [1, 1]} : vector<4x324xf32> to vector<1x324xf32>
    %16 = vector.broadcast %14 : vector<8x1xf32> to vector<8x324xf32>
    %17 = vector.broadcast %15 : vector<1x324xf32> to vector<8x324xf32>
    %18 = arith.mulf %16, %17 : vector<8x324xf32>
    %19 = arith.addf %13, %18 : vector<8x324xf32>
    %20 = vector.extract_strided_slice %7 {offsets = [0, 2], sizes = [8, 1], strides = [1, 1]} : vector<8x4xf32> to vector<8x1xf32>
    %21 = vector.extract_strided_slice %6 {offsets = [2, 0], sizes = [1, 324], strides = [1, 1]} : vector<4x324xf32> to vector<1x324xf32>
    %22 = vector.broadcast %20 : vector<8x1xf32> to vector<8x324xf32>
    %23 = vector.broadcast %21 : vector<1x324xf32> to vector<8x324xf32>
    %24 = arith.mulf %22, %23 : vector<8x324xf32>
    %25 = arith.addf %19, %24 : vector<8x324xf32>
    %26 = vector.extract_strided_slice %7 {offsets = [0, 3], sizes = [8, 1], strides = [1, 1]} : vector<8x4xf32> to vector<8x1xf32>
    %27 = vector.extract_strided_slice %6 {offsets = [3, 0], sizes = [1, 324], strides = [1, 1]} : vector<4x324xf32> to vector<1x324xf32>
    %28 = vector.broadcast %26 : vector<8x1xf32> to vector<8x324xf32>
    %29 = vector.broadcast %27 : vector<1x324xf32> to vector<8x324xf32>
    %30 = arith.mulf %28, %29 : vector<8x324xf32>
    %31 = arith.addf %25, %30 : vector<8x324xf32>
    %c0_9 = arith.constant 0 : index
    %c0_10 = arith.constant 0 : index
    %c0_11 = arith.constant 0 : index
    %32 = vector.load %arg5[%c0_9, %c0_10, %c0_11] : memref<1x8x324xf32, #tpu.memory_space<vmem>>, vector<1x8x324xf32>
    %33 = vector.shape_cast %32 : vector<1x8x324xf32> to vector<8x324xf32>
    %34 = vector.shape_cast %31 : vector<8x324xf32> to vector<1x8x324xf32>
    tpu.vector_store %arg5[%c0_9, %c0_10, %c0_11], %34 {strides = array<i32>} : memref<1x8x324xf32, #tpu.memory_space<vmem>>, vector<1x8x324xf32>,
    return
  }
  func.func @transform_0(%arg0: i32) -> (i32, i32, i32) {
    %c0_i32 = arith.constant 0 : i32
    %c0_i32_0 = arith.constant 0 : i32
    %c0_i32_1 = arith.constant 0 : i32
    return %arg0, %c0_i32, %c0_i32_0 : i32, i32, i32
  }
  func.func @transform_1(%arg0: i32) -> (i32, i32) {
    %c0_i32 = arith.constant 0 : i32
    %c0_i32_0 = arith.constant 0 : i32
    %c0_i32_1 = arith.constant 0 : i32
    return %c0_i32, %c0_i32_0 : i32, i32
  }
  func.func @transform_2(%arg0: i32) -> (i32, i32) {
    %c0_i32 = arith.constant 0 : i32
    %c0_i32_0 = arith.constant 0 : i32
    %c0_i32_1 = arith.constant 0 : i32
    return %c0_i32, %c0_i32_0 : i32, i32
  }
  func.func @transform_3(%arg0: i32) -> (i32, i32, i32) {
    %c0_i32 = arith.constant 0 : i32
    %c0_i32_0 = arith.constant 0 : i32
    %c0_i32_1 = arith.constant 0 : i32
    return %arg0, %c0_i32, %c0_i32_0 : i32, i32, i32
  }
  func.func @transform_4(%arg0: i32) -> (i32, i32, i32) {
    %c0_i32 = arith.constant 0 : i32
    %c0_i32_0 = arith.constant 0 : i32
    %c0_i32_1 = arith.constant 0 : i32
    return %arg0, %c0_i32, %c0_i32_0 : i32, i32, i32
  }
}

</mosaic_0001>

<llo_original>
// kernel: tpu_custom_call.1
$region0: #{tpu_custom_call.1}
  #allocation0 [shape = 'u32[]', space=smem, size = 0x4, offset = 0x4, fixed_abs, tag = 'smem constant byte address 0x4 - core index']
  #allocation1 [shape = 'u32[144,128]{1,0:T(1,128)}', space=vmem, size = 0x12000, scoped, tag = 'internal scratch']
  #allocation2 [shape = 's32[1]{0}', space=sflag, size = 0x4, scoped, tag = 'scoped memory for tpu_custom_call.1']
  #allocation3 [shape = 'u8[512]{0}', space=smem, size = 0x200, scoped, tag = 'prefetched SMEM operand 0']
  %s0 = inlined_call_operand.hbm [shape: s32[2], index: 0, kind: input, shape index: {}]
  %s1 = inlined_call_operand.vmem [shape: f32[2,4,324], index: 1, kind: input, shape index: {}]
  %s2 = inlined_call_operand.vmem [shape: f32[8,4], index: 2, kind: input, shape index: {}]
  %s3 = inlined_call_operand.vmem [shape: f32[8,1], index: 3, kind: input, shape index: {}]
  %s4 = inlined_call_operand.hbm [shape: f32[2,8,324], index: 4, kind: output, shape index: {0}]
  %s5 = inlined_call_operand.hbm [shape: f32[2,8,324], index: 5, kind: output, shape index: {1}]
  %6 = xla_tuple %s4, %s5
  %s7 = sld [smem:[#allocation0]]
  $region53: #{tpu_custom_call.1} parent=0
    _
  %s9 = ssub.s32 1, %s7
  %s10 = scalar_select 0, %s9, %s7
  %12 = dma.hbm_to_smem %s0, 16, [#allocation3], [#allocation2]
  %13 = dma.done [#allocation2], 16
  %14 = sfence
  $region1: #{tpu_custom_call.1} parent=0
    #allocation4 [shape = 'u8[24576]{0}', space=vmem, size = 0x6000, scoped, tag = 'output window, operand 0']
    #allocation5 [shape = 's32[2]{0}', space=sflag, size = 0x8, scoped, tag = 'scoped memory for tpu_custom_call.1']
    #allocation6 [shape = 'u8[24576]{0}', space=vmem, size = 0x6000, scoped, tag = 'output window, operand 1']
    #allocation7 [shape = 's32[2]{0}', space=sflag, size = 0x8, scoped, tag = 'scoped memory for tpu_custom_call.1']
    %15 = vsyncpa [#allocation5], 0
    %s16 = scalar_lea.sflag [#allocation5], 1
    %17 = vsyncpa %s16, 0
    %18 = vsyncpa [#allocation7], 0
    %s19 = scalar_lea.sflag [#allocation7], 1
    %20 = vsyncpa %s19, 0
    loop: start=0, step=1, limit=4
    $region2: #{tpu_custom_call.1} parent=1 // loop_pre_header
      _
    $region3: #{tpu_custom_call.1} parent=1 // loop_header
      %s22 = sphi 0, %s26
      %p23 = scmp.ge.s32.totalorder %s22, 4
      %s32 = sphi 0, %s34
      %s35 = sphi 0, %s32
      %s36 = sphi 0, %s35
      %s52 = sphi 0, %s36
      %s56 = sphi 0, %s56
      %s58 = sphi 0, %s56
      %s59 = sphi 0, %s58
      %s73 = sphi 0, %s59
      %s77 = sphi 0, %s77
      %s79 = sphi 0, %s77
      %s80 = sphi 0, %s79
      %s94 = sphi 0, %s80
      %s100 = sphi 0, %s102
      %s103 = sphi 0, %s100
      %s104 = sphi 0, %s103
      %s120 = sphi 0, %s104
      %s126 = sphi 0, %s128
      %s129 = sphi 0, %s126
      %s130 = sphi 0, %s129
      %s146 = sphi 0, %s130
    $region4: #{tpu_custom_call.1} parent=1 // loop_header_branch
      %25 = sbr.rel (%p23) target = $region8
    $region5: #{tpu_custom_call.1} parent=1 // loop_body
      %s27 = ssub.s32 %s22, 1
      %s28 = ssub.s32 %s22, 2
      %s29 = sadd.s32 %s22, 1
      %s30 = ssub.s32 %s22, %s29
      %p31 = scmp.eq.s32.totalorder %s30, 0
      %s33 = sadd.s32 %s32, 1
      %s34 = scalar_select %p31, %s32, %s33
      %p37 = pneg %p31
      %p38 = scmp.eq.s32.totalorder %s22, 1
      %p39 = por %p37, %p38
      %p40 = scmp.ne.s32.totalorder %s32, %s35
      %p41 = scmp.eq.s32.totalorder %s22, 0
      %p42 = por %p40, %p41
      %p43 = scmp.ne.s32.totalorder %s32, %s35
      %p44 = scmp.eq.s32.totalorder %s27, 1
      %p45 = por %p43, %p44
      %p46 = scmp.ne.s32.totalorder %s35, %s36
      %p47 = scmp.eq.s32.totalorder %s27, 0
      %p48 = por %p46, %p47
      %p49 = scmp.ne.s32.totalorder %s35, %s36
      %p50 = scmp.eq.s32.totalorder %s28, 1
      %p51 = por %p49, %p50
      %p53 = scmp.ne.s32.totalorder %s36, %s52
      %p54 = scmp.eq.s32.totalorder %s28, 0
      %p55 = por %p53, %p54
      %s57 = sadd.s32 %s56, 1
      %p60 = scmp.eq.s32.totalorder %s22, 1
      %p61 = scmp.ne.s32.totalorder %s56, %s58
      %p62 = scmp.eq.s32.totalorder %s22, 0
      %p63 = por %p61, %p62
      %p64 = scmp.ne.s32.totalorder %s56, %s58
      %p65 = scmp.eq.s32.totalorder %s27, 1
      %p66 = por %p64, %p65
      %p67 = scmp.ne.s32.totalorder %s58, %s59
      %p68 = scmp.eq.s32.totalorder %s27, 0
      %p69 = por %p67, %p68
      %p70 = scmp.ne.s32.totalorder %s58, %s59
      %p71 = scmp.eq.s32.totalorder %s28, 1
      %p72 = por %p70, %p71
      %p74 = scmp.ne.s32.totalorder %s59, %s73
      %p75 = scmp.eq.s32.totalorder %s28, 0
      %p76 = por %p74, %p75
      %s78 = sadd.s32 %s77, 1
      %p81 = scmp.eq.s32.totalorder %s22, 1
      %p82 = scmp.ne.s32.totalorder %s77, %s79
      %p83 = scmp.eq.s32.totalorder %s22, 0
      %p84 = por %p82, %p83
      %p85 = scmp.ne.s32.totalorder %s77, %s79
      %p86 = scmp.eq.s32.totalorder %s27, 1
      %p87 = por %p85, %p86
      %p88 = scmp.ne.s32.totalorder %s79, %s80
      %p89 = scmp.eq.s32.totalorder %s27, 0
      %p90 = por %p88, %p89
      %p91 = scmp.ne.s32.totalorder %s79, %s80
      %p92 = scmp.eq.s32.totalorder %s28, 1
      %p93 = por %p91, %p92
      %p95 = scmp.ne.s32.totalorder %s80, %s94
      %p96 = scmp.eq.s32.totalorder %s28, 0
      %p97 = por %p95, %p96
      %s98 = ssub.s32 %s22, %s29
      %p99 = scmp.eq.s32.totalorder %s98, 0
      %s101 = sadd.s32 %s100, 1
      %s102 = scalar_select %p99, %s100, %s101
      %p105 = pneg %p99
      %p106 = scmp.eq.s32.totalorder %s22, 1
      %p107 = por %p105, %p106
      %p108 = scmp.ne.s32.totalorder %s100, %s103
      %p109 = scmp.eq.s32.totalorder %s22, 0
      %p110 = por %p108, %p109
      %p111 = scmp.ne.s32.totalorder %s100, %s103
      %p112 = scmp.eq.s32.totalorder %s27, 1
      %p113 = por %p111, %p112
      %p114 = scmp.ne.s32.totalorder %s103, %s104
      %p115 = scmp.eq.s32.totalorder %s27, 0
      %p116 = por %p114, %p115
      %p117 = scmp.ne.s32.totalorder %s103, %s104
      %p118 = scmp.eq.s32.totalorder %s28, 1
      %p119 = por %p117, %p118
      %p121 = scmp.ne.s32.totalorder %s104, %s120
      %p122 = scmp.eq.s32.totalorder %s28, 0
      %p123 = por %p121, %p122
      %s124 = ssub.s32 %s22, %s29
      %p125 = scmp.eq.s32.totalorder %s124, 0
      %s127 = sadd.s32 %s126, 1
      %s128 = scalar_select %p125, %s126, %s127
      %p131 = pneg %p125
      %p132 = scmp.eq.s32.totalorder %s22, 1
      %p133 = por %p131, %p132
      %p134 = scmp.ne.s32.totalorder %s126, %s129
      %p135 = scmp.eq.s32.totalorder %s22, 0
      %p136 = por %p134, %p135
      %p137 = scmp.ne.s32.totalorder %s126, %s129
      %p138 = scmp.eq.s32.totalorder %s27, 1
      %p139 = por %p137, %p138
      %p140 = scmp.ne.s32.totalorder %s129, %s130
      %p141 = scmp.eq.s32.totalorder %s27, 0
      %p142 = por %p140, %p141
      %p143 = scmp.ne.s32.totalorder %s129, %s130
      %p144 = scmp.eq.s32.totalorder %s28, 1
      %p145 = por %p143, %p144
      %p147 = scmp.ne.s32.totalorder %s130, %s146
      %p148 = scmp.eq.s32.totalorder %s28, 0
      %p149 = por %p147, %p148
      %p150 = scmp.le.s32.totalorder 1, %s22
      %p151 = scmp.lt.s32.totalorder %s22, 3
      %p152 = pnand %p150, %p151
      %p153 = pneg %p152
      // Predicated region
      $region9: #{tpu_custom_call.1} parent=5 // pred_check
        _
      $region10: #{tpu_custom_call.1} parent=5 // pred_check_branch
        %155 = sbr.rel (%p152) target = $region12
      $region11: #{tpu_custom_call.1} parent=5 // pred_region
        %s156 = ssub.s32 %s22, 1
        // Predicated region
        $region13: #{tpu_custom_call.1} parent=11 // pred_check
          %p157 = pneg %p69
        $region14: #{tpu_custom_call.1} parent=11 // pred_check_branch
          %159 = sbr.rel (%p157) target = $region16
        $region15: #{tpu_custom_call.1} parent=11 // pred_region
          _
        $region16: #{tpu_custom_call.1} parent=11 // pred_fallthru
          _
        // Predicated region
        $region17: #{tpu_custom_call.1} parent=11 // pred_check
          %p160 = pneg %p90
        $region18: #{tpu_custom_call.1} parent=11 // pred_check_branch
          %162 = sbr.rel (%p160) target = $region20
        $region19: #{tpu_custom_call.1} parent=11 // pred_region
          _
        $region20: #{tpu_custom_call.1} parent=11 // pred_fallthru
          _
      $region12: #{tpu_custom_call.1} parent=5 // pred_fallthru
        _
      %p163 = scmp.lt.s32.totalorder %s22, 2
      // Predicated region
      $region21: #{tpu_custom_call.1} parent=5 // pred_check
        %p164 = pneg %p163
      $region22: #{tpu_custom_call.1} parent=5 // pred_check_branch
        %166 = sbr.rel (%p164) target = $region24
      $region23: #{tpu_custom_call.1} parent=5 // pred_region
        // Predicated region
        $region25: #{tpu_custom_call.1} parent=23 // pred_check
          %p167 = pneg %p42
        $region26: #{tpu_custom_call.1} parent=23 // pred_check_branch
          %169 = sbr.rel (%p167) target = $region28
        $region27: #{tpu_custom_call.1} parent=23 // pred_region
          %p170 = scmp.lt.s32.totalorder %s22, 1
          %s171 = scalar_select %p170, %s22, 1
          %s172 = smul.addr %s171, 3
          %s173 = smul.addr %s172, 4
          %s174 = scalar_lea.vmem %s1, %s173
        $region28: #{tpu_custom_call.1} parent=23 // pred_fallthru
          _
      $region24: #{tpu_custom_call.1} parent=5 // pred_fallthru
        _
      %p175 = scmp.le.s32.totalorder 1, %s22
      %p176 = scmp.lt.s32.totalorder %s22, 3
      %p177 = pnand %p175, %p176
      %p178 = pneg %p177
      // Predicated region
      $region29: #{tpu_custom_call.1} parent=5 // pred_check
        _
      $region30: #{tpu_custom_call.1} parent=5 // pred_check_branch
        %180 = sbr.rel (%p177) target = $region32
      $region31: #{tpu_custom_call.1} parent=5 // pred_region
        %s181 = ssub.s32 %s22, 1
        %p182 = scmp.lt.s32.totalorder %s27, 1
        %s183 = scalar_select %p182, %s27, 1
        %s184 = smul.addr %s183, 3
        %s185 = smul.addr %s184, 4
        %s186 = scalar_lea.vmem %s1, %s185
        %p187 = pneg %p48
        %p188 = pneg %p45
        %p189 = pneg %p69
        %p190 = pneg %p66
        %p191 = pneg %p90
        %p192 = pneg %p87
        %p193 = pneg %p116
        %p194 = pneg %p113
        %s195 = sand.u32 %s103, 1
        %s196 = scalar_lea.sflag [#allocation5], %s195
        %s197 = sand.u32 %s103, 1
        %s198 = smul.addr %s197, 24
        %s199 = scalar_lea.vmem [#allocation4], %s198
        %p200 = pneg %p142
        %p201 = pneg %p139
        %s202 = sand.u32 %s129, 1
        %s203 = scalar_lea.sflag [#allocation7], %s202
        %s204 = sand.u32 %s129, 1
        %s205 = smul.addr %s204, 24
        %s206 = scalar_lea.vmem [#allocation6], %s205
        %p207 = scmp.lt.s32.totalorder %s27, 1
        %s208 = scalar_select %p207, %s27, 1
        %s209 = smul.addr %s208, 3
        %s210 = smul.addr %s209, 4
        %s211 = scalar_lea.vmem %s1, %s210
        %s212 = sld [smem:[#allocation3 + %s27]]
        %v213 = vlaneseq
        %v214 = vstv %s212
        %v215 = vxor.u32 %v214, %v214
        %v216 = vxor.u32 %v215, 466688986
        %v217 = vadd.s32 %v213, %v214
        %v218 = vadd.s32 %v217, %v217
        %v219 = vshll.u32 %v217, 13
        %v220 = vshrl.u32 %v217, 19
        %v221 = vor.u32 %v219, %v220
        %v222 = vxor.u32 %v218, %v221
        %v223 = vadd.s32 %v218, %v222
        %v224 = vshll.u32 %v222, 15
        %v225 = vshrl.u32 %v222, 17
        %v226 = vor.u32 %v224, %v225
        %v227 = vxor.u32 %v223, %v226
        %v228 = vadd.s32 %v223, %v227
        %v229 = vshll.u32 %v227, 26
        %v230 = vshrl.u32 %v227, 6
        %v231 = vor.u32 %v229, %v230
        %v232 = vxor.u32 %v228, %v231
        %v233 = vadd.s32 %v228, %v232
        %v234 = vshll.u32 %v232, 6
        %v235 = vshrl.u32 %v232, 26
        %v236 = vor.u32 %v234, %v235
        %v237 = vxor.u32 %v233, %v236
        %v238 = vadd.s32 %v233, %v214
        %v239 = vadd.s32 %v237, %v216
        %v240 = vadd.s32 %v239, 1
        %v241 = vadd.s32 %v238, %v240
        %v242 = vshll.u32 %v240, 17
        %v243 = vshrl.u32 %v240, 15
        %v244 = vor.u32 %v242, %v243
        %v245 = vxor.u32 %v241, %v244
        %v246 = vadd.s32 %v241, %v245
        %v247 = vshll.u32 %v245, 29
        %v248 = vshrl.u32 %v245, 3
        %v249 = vor.u32 %v247, %v248
        %v250 = vxor.u32 %v246, %v249
        %v251 = vadd.s32 %v246, %v250
        %v252 = vshll.u32 %v250, 16
        %v253 = vshrl.u32 %v250, 16
        %v254 = vor.u32 %v252, %v253
        %v255 = vxor.u32 %v251, %v254
        %v256 = vadd.s32 %v251, %v255
        %v257 = vshll.u32 %v255, 24
        %v258 = vshrl.u32 %v255, 8
        %v259 = vor.u32 %v257, %v258
        %v260 = vxor.u32 %v256, %v259
        %v261 = vadd.s32 %v256, %v216
        %v262 = vadd.s32 %v260, %v214
        %v263 = vadd.s32 %v262, 2
        %v264 = vadd.s32 %v261, %v263
        %v265 = vshll.u32 %v263, 13
        %v266 = vshrl.u32 %v263, 19
        %v267 = vor.u32 %v265, %v266
        %v268 = vxor.u32 %v264, %v267
        %v269 = vadd.s32 %v264, %v268
        %v270 = vshll.u32 %v268, 15
        %v271 = vshrl.u32 %v268, 17
        %v272 = vor.u32 %v270, %v271
        %v273 = vxor.u32 %v269, %v272
        %v274 = vadd.s32 %v269, %v273
        %v275 = vshll.u32 %v273, 26
        %v276 = vshrl.u32 %v273, 6
        %v277 = vor.u32 %v275, %v276
        %v278 = vxor.u32 %v274, %v277
        %v279 = vadd.s32 %v274, %v278
        %v280 = vshll.u32 %v278, 6
        %v281 = vshrl.u32 %v278, 26
        %v282 = vor.u32 %v280, %v281
        %v283 = vxor.u32 %v279, %v282
        %v284 = vadd.s32 %v279, %v214
        %v285 = vadd.s32 %v283, %v214
        %v286 = vadd.s32 %v285, 3
        %v287 = vadd.s32 %v284, %v286
        %v288 = vshll.u32 %v286, 17
        %v289 = vshrl.u32 %v286, 15
        %v290 = vor.u32 %v288, %v289
        %v291 = vxor.u32 %v287, %v290
        %v292 = vadd.s32 %v287, %v291
        %v293 = vshll.u32 %v291, 29
        %v294 = vshrl.u32 %v291, 3
        %v295 = vor.u32 %v293, %v294
        %v296 = vxor.u32 %v292, %v295
        %v297 = vadd.s32 %v292, %v296
        %v298 = vshll.u32 %v296, 16
        %v299 = vshrl.u32 %v296, 16
        %v300 = vor.u32 %v298, %v299
        %v301 = vxor.u32 %v297, %v300
        %v302 = vadd.s32 %v297, %v301
        %v303 = vshll.u32 %v301, 24
        %v304 = vshrl.u32 %v301, 8
        %v305 = vor.u32 %v303, %v304
        %v306 = vxor.u32 %v302, %v305
        %v307 = vadd.s32 %v302, %v214
        %v308 = vadd.s32 %v306, %v216
        %v309 = vadd.s32 %v308, 4
        %v310 = vadd.s32 %v307, %v309
        %v311 = vshll.u32 %v309, 13
        %v312 = vshrl.u32 %v309, 19
        %v313 = vor.u32 %v311, %v312
        %v314 = vxor.u32 %v310, %v313
        %v315 = vadd.s32 %v310, %v314
        %v316 = vshll.u32 %v314, 15
        %v317 = vshrl.u32 %v314, 17
        %v318 = vor.u32 %v316, %v317
        %v319 = vxor.u32 %v315, %v318
        %v320 = vadd.s32 %v315, %v319
        %v321 = vshll.u32 %v319, 26
        %v322 = vshrl.u32 %v319, 6
        %v323 = vor.u32 %v321, %v322
        %v324 = vxor.u32 %v320, %v323
        %v325 = vadd.s32 %v320, %v324
        %v326 = vshll.u32 %v324, 6
        %v327 = vshrl.u32 %v324, 26
        %v328 = vor.u32 %v326, %v327
        %v329 = vxor.u32 %v325, %v328
        %v330 = vadd.s32 %v325, %v216
        %v331 = vadd.s32 %v329, %v214
        %v332 = vadd.s32 %v331, 5
        %v333 = vxor.u32 %v330, %v332
        %334 = set.rngseed %v333
        %v335 = vrng
        %v336 = vrng
        %v337 = vrng
        %v338 = vshrl.u32 %v335, 9
        %v339 = vshrl.u32 %v336, 9
        %v340 = vshrl.u32 %v337, 9
        %v341 = vor.u32 %v338, 1065353216
        %v342 = vor.u32 %v339, 1065353216
        %v343 = vor.u32 %v340, 1065353216
        %v347 = vsub.f32 %v341, 1.0
        %v348 = vsub.f32 %v342, 1.0
        %v349 = vsub.f32 %v343, 1.0
        %v350 = vmul.f32 %v347, 2.0
        %v351 = vmul.f32 %v348, 2.0
        %v352 = vmul.f32 %v349, 2.0
        %v353 = vadd.f32 %v350, -0.99999994
        %v354 = vadd.f32 %v351, -0.99999994
        %v355 = vadd.f32 %v352, -0.99999994
        %v356 = vmax.f32 %v353, -0.99999994
        %v357 = vmax.f32 %v354, -0.99999994
        %v358 = vmax.f32 %v355, -0.99999994
        %v359 = vsub.f32 0.0, %v356
        %v360 = vsub.f32 0.0, %v357
        %v361 = vsub.f32 0.0, %v358
        %v362 = vmul.f32 %v356, %v359
        %v363 = vmul.f32 %v357, %v360
        %v364 = vmul.f32 %v358, %v361
        %v365 = vadd.f32 %v362, 1.0
        %v366 = vlog2.pop %v365
        %v367 = vmul.f32 %v366, 0.6931472
        %v368 = vmul.f32 -0.5, %v362
        %v369 = vadd.f32 %v368, 1.0
        %v370 = vmul.f32 %v369, %v362
        %v371 = vand.u32 2147483647, %v362
        %vm372 = vcmp.lt.f32.partialorder %v371, 0.0004427343
        %v373 = vsel %vm372, %v370, %v367
        %v374 = vadd.f32 %v363, 1.0
        %v375 = vlog2.pop %v374
        %v376 = vmul.f32 %v375, 0.6931472
        %v377 = vmul.f32 -0.5, %v363
        %v378 = vadd.f32 %v377, 1.0
        %v379 = vmul.f32 %v378, %v363
        %v380 = vand.u32 2147483647, %v363
        %vm381 = vcmp.lt.f32.partialorder %v380, 0.0004427343
        %v382 = vsel %vm381, %v379, %v376
        %v383 = vadd.f32 %v364, 1.0
        %v384 = vlog2.pop %v383
        %v385 = vmul.f32 %v384, 0.6931472
        %v386 = vmul.f32 -0.5, %v364
        %v387 = vadd.f32 %v386, 1.0
        %v388 = vmul.f32 %v387, %v364
        %v389 = vand.u32 2147483647, %v364
        %vm390 = vcmp.lt.f32.partialorder %v389, 0.0004427343
        %v391 = vsel %vm390, %v388, %v385
        %v392 = vsub.f32 0.0, %v373
        %v393 = vsub.f32 0.0, %v382
        %v394 = vsub.f32 0.0, %v391
        %vm395 = vcmp.lt.f32.partialorder %v392, 5.0
        %vm396 = vcmp.lt.f32.partialorder %v393, 5.0
        %vm397 = vcmp.lt.f32.partialorder %v394, 5.0
        %v398 = vsub.f32 %v392, 2.5
        %v399 = vsub.f32 %v393, 2.5
        %v400 = vsub.f32 %v394, 2.5
        %v401 = vrsqrt.pop %v392
        %v402 = vmul.f32 %v392, %v401
        %vm403 = vcmp.eq.f32.partialorder %v392, inf
        %v404 = vsel %vm403, %v392, %v402
        %vm405 = vcmp.eq.f32.partialorder %v392, 0.0
        %v406 = vand.u32 %v392, 2147483648
        %v407 = vsel %vm405, %v406, %v404
        %v408 = vrsqrt.pop %v393
        %v409 = vmul.f32 %v393, %v408
        %vm410 = vcmp.eq.f32.partialorder %v393, inf
        %v411 = vsel %vm410, %v393, %v409
        %vm412 = vcmp.eq.f32.partialorder %v393, 0.0
        %v413 = vand.u32 %v393, 2147483648
        %v414 = vsel %vm412, %v413, %v411
        %v415 = vrsqrt.pop %v394
        %v416 = vmul.f32 %v394, %v415
        %vm417 = vcmp.eq.f32.partialorder %v394, inf
        %v418 = vsel %vm417, %v394, %v416
        %vm419 = vcmp.eq.f32.partialorder %v394, 0.0
        %v420 = vand.u32 %v394, 2147483648
        %v421 = vsel %vm419, %v420, %v418
        %v422 = vsub.f32 %v407, 3.0
        %v423 = vsub.f32 %v414, 3.0
        %v424 = vsub.f32 %v421, 3.0
        %v425 = vsel %vm395, %v398, %v422
        %v426 = vsel %vm396, %v399, %v423
        %v427 = vsel %vm397, %v400, %v424
        %v428 = vsel %vm395, 2.8102264e-08, -0.00020021426
        %v429 = vsel %vm396, 2.8102264e-08, -0.00020021426
        %v430 = vsel %vm397, 2.8102264e-08, -0.00020021426
        %v431 = vsel %vm395, 3.4327394e-07, 0.00010095056
        %v432 = vsel %vm396, 3.4327394e-07, 0.00010095056
        %v433 = vsel %vm397, 3.4327394e-07, 0.00010095056
        %v434 = vmul.f32 %v428, %v425
        %v435 = vmul.f32 %v429, %v426
        %v436 = vmul.f32 %v430, %v427
        %v437 = vadd.f32 %v431, %v434
        %v438 = vadd.f32 %v432, %v435
        %v439 = vadd.f32 %v433, %v436
        %v440 = vsel %vm395, -3.5233877e-06, 0.0013493432
        %v441 = vsel %vm396, -3.5233877e-06, 0.0013493432
        %v442 = vsel %vm397, -3.5233877e-06, 0.0013493432
        %v443 = vmul.f32 %v437, %v425
        %v444 = vmul.f32 %v438, %v426
        %v445 = vmul.f32 %v439, %v427
        %v446 = vadd.f32 %v440, %v443
        %v447 = vadd.f32 %v441, %v444
        %v448 = vadd.f32 %v442, %v445
        %v449 = vsel %vm395, -4.3915065e-06, -0.0036734284
        %v450 = vsel %vm396, -4.3915065e-06, -0.0036734284
        %v451 = vsel %vm397, -4.3915065e-06, -0.0036734284
        %v452 = vmul.f32 %v446, %v425
        %v453 = vmul.f32 %v447, %v426
        %v454 = vmul.f32 %v448, %v427
        %v455 = vadd.f32 %v449, %v452
        %v456 = vadd.f32 %v450, %v453
        %v457 = vadd.f32 %v451, %v454
        %v458 = vsel %vm395, 0.00021858087, 0.0057395077
        %v459 = vsel %vm396, 0.00021858087, 0.0057395077
        %v460 = vsel %vm397, 0.00021858087, 0.0057395077
        %v461 = vmul.f32 %v455, %v425
        %v462 = vmul.f32 %v456, %v426
        %v463 = vmul.f32 %v457, %v427
        %v464 = vadd.f32 %v458, %v461
        %v465 = vadd.f32 %v459, %v462
        %v466 = vadd.f32 %v460, %v463
        %v467 = vsel %vm395, -0.001253725, -0.0076224613
        %v468 = vsel %vm396, -0.001253725, -0.0076224613
        %v469 = vsel %vm397, -0.001253725, -0.0076224613
        %v470 = vmul.f32 %v464, %v425
        %v471 = vmul.f32 %v465, %v426
        %v472 = vmul.f32 %v466, %v427
        %v473 = vadd.f32 %v467, %v470
        %v474 = vadd.f32 %v468, %v471
        %v475 = vadd.f32 %v469, %v472
        %v476 = vsel %vm395, -0.0041776816, 0.0094388705
        %v477 = vsel %vm396, -0.0041776816, 0.0094388705
        %v478 = vsel %vm397, -0.0041776816, 0.0094388705
        %v479 = vmul.f32 %v473, %v425
        %v480 = vmul.f32 %v474, %v426
        %v481 = vmul.f32 %v475, %v427
        %v482 = vadd.f32 %v476, %v479
        %v483 = vadd.f32 %v477, %v480
        %v484 = vadd.f32 %v478, %v481
        %v485 = vsel %vm395, 0.24664073, 1.001674
        %v486 = vsel %vm396, 0.24664073, 1.001674
        %v487 = vsel %vm397, 0.24664073, 1.001674
        %v488 = vmul.f32 %v482, %v425
        %v489 = vmul.f32 %v483, %v426
        %v490 = vmul.f32 %v484, %v427
        %v491 = vadd.f32 %v485, %v488
        %v492 = vadd.f32 %v486, %v489
        %v493 = vadd.f32 %v487, %v490
        %v494 = vsel %vm395, 1.5014094, 2.8329768
        %v495 = vsel %vm396, 1.5014094, 2.8329768
        %v496 = vsel %vm397, 1.5014094, 2.8329768
        %v497 = vmul.f32 %v491, %v425
        %v498 = vmul.f32 %v492, %v426
        %v499 = vmul.f32 %v493, %v427
        %v500 = vadd.f32 %v494, %v497
        %v501 = vadd.f32 %v495, %v498
        %v502 = vadd.f32 %v496, %v499
        %v503 = vand.u32 2147483647, %v356
        %v504 = vand.u32 2147483647, %v357
        %v505 = vand.u32 2147483647, %v358
        %vm506 = vcmp.eq.f32.partialorder %v503, 1.0
        %vm507 = vcmp.eq.f32.partialorder %v504, 1.0
        %vm508 = vcmp.eq.f32.partialorder %v505, 1.0
        %v509 = vmul.f32 %v356, inf
        %v510 = vmul.f32 %v357, inf
        %v511 = vmul.f32 %v358, inf
        %v512 = vmul.f32 %v500, %v356
        %v513 = vmul.f32 %v501, %v357
        %v514 = vmul.f32 %v502, %v358
        %v515 = vsel %vm506, %v509, %v512
        %v516 = vsel %vm507, %v510, %v513
        %v517 = vsel %vm508, %v511, %v514
        %v518 = vmul.f32 %v515, 1.4142135
        %v519 = vmul.f32 %v516, 1.4142135
        %v520 = vmul.f32 %v517, 1.4142135
        %521 = vst [vmem:[%s206] sm:$0xff] %v518
        %522 = vst [vmem:[%s206 + $0x8] sm:$0xff] %v519
        %vm523 = vcmask 556032
        %524 = vst.msk [vmem:[%s206 + $0x10] sm:$0xff] %vm523, %v520
        %v525 = vld [vmem:[%s3] sm:$0xff]
        %527 = vset.pattern.permute.xlu0 0
        %528 = vperm.xlu0 %527, %v525
        %v529 = vpop.permute.xlu0 %528
        %v531 = vadd.f32 %v518, %v529
        %v532 = vadd.f32 %v519, %v529
        %v533 = vadd.f32 %v520, %v529
        %v534 = vld [vmem:[%s211] sm:$0xff]
        %v535 = vld [vmem:[%s211 + $0x8] sm:$0xf]
        %v536 = vld [vmem:[%s2] sm:$0xff]
        %538 = vset.pattern.permute.xlu0 0
        %539 = vperm.xlu0 %538, %v536
        %v540 = vpop.permute.xlu0 %539
        %v544 = vlaneseq
        %v545 = vshrl.u32 %v544, 7
        %v546 = vsub.s32 0, %v545
        %v547 = vrot.slane %v534, %v546
        %v548 = vlaneseq
        %v549 = vshrl.u32 %v548, 7
        %v550 = vsub.s32 4, %v549
        %v551 = vrot.slane %v534, %v550
        %v552 = vlaneseq
        %v553 = vshrl.u32 %v552, 7
        %v554 = vsub.s32 0, %v553
        %v555 = vrot.slane %v535, %v554
        %v559 = vlaneseq
        %v560 = vshrl.u32 %v559, 7
        %v561 = vsub.s32 0, %v560
        %v562 = vrot.slane %v547, %v561
        %v563 = vlaneseq
        %v564 = vshrl.u32 %v563, 7
        %v565 = vsub.s32 0, %v564
        %v566 = vrot.slane %v551, %v565
        %v567 = vlaneseq
        %v568 = vshrl.u32 %v567, 7
        %v569 = vsub.s32 0, %v568
        %v570 = vrot.slane %v555, %v569
        %v571 = vmul.f32 %v540, %v562
        %v572 = vmul.f32 %v540, %v566
        %v573 = vmul.f32 %v540, %v570
        %v574 = vadd.f32 %v531, %v571
        %v575 = vadd.f32 %v532, %v572
        %v576 = vadd.f32 %v533, %v573
        %577 = vset.pattern.permute.xlu0 1
        %578 = vperm.xlu0 %577, %v536
        %v579 = vpop.permute.xlu0 %578
        %v581 = vlaneseq
        %v582 = vshrl.u32 %v581, 7
        %v583 = vsub.s32 1, %v582
        %v584 = vrot.slane %v534, %v583
        %v585 = vlaneseq
        %v586 = vshrl.u32 %v585, 7
        %v587 = vsub.s32 5, %v586
        %v588 = vrot.slane %v534, %v587
        %v589 = vlaneseq
        %v590 = vshrl.u32 %v589, 7
        %v591 = vsub.s32 1, %v590
        %v592 = vrot.slane %v535, %v591
        %v596 = vlaneseq
        %v597 = vshrl.u32 %v596, 7
        %v598 = vsub.s32 1, %v597
        %v599 = vrot.slane %v584, %v598
        %v600 = vlaneseq
        %v601 = vshrl.u32 %v600, 7
        %v602 = vsub.s32 1, %v601
        %v603 = vrot.slane %v588, %v602
        %v604 = vlaneseq
        %v605 = vshrl.u32 %v604, 7
        %v606 = vsub.s32 1, %v605
        %v607 = vrot.slane %v592, %v606
        %v608 = vmul.f32 %v579, %v599
        %v609 = vmul.f32 %v579, %v603
        %v610 = vmul.f32 %v579, %v607
        %v611 = vadd.f32 %v574, %v608
        %v612 = vadd.f32 %v575, %v609
        %v613 = vadd.f32 %v576, %v610
        %614 = vset.pattern.permute.xlu0 2
        %615 = vperm.xlu0 %614, %v536
        %v616 = vpop.permute.xlu0 %615
        %v618 = vlaneseq
        %v619 = vshrl.u32 %v618, 7
        %v620 = vsub.s32 2, %v619
        %v621 = vrot.slane %v534, %v620
        %v622 = vlaneseq
        %v623 = vshrl.u32 %v622, 7
        %v624 = vsub.s32 6, %v623
        %v625 = vrot.slane %v534, %v624
        %v626 = vlaneseq
        %v627 = vshrl.u32 %v626, 7
        %v628 = vsub.s32 2, %v627
        %v629 = vrot.slane %v535, %v628
        %v633 = vlaneseq
        %v634 = vshrl.u32 %v633, 7
        %v635 = vsub.s32 2, %v634
        %v636 = vrot.slane %v621, %v635
        %v637 = vlaneseq
        %v638 = vshrl.u32 %v637, 7
        %v639 = vsub.s32 2, %v638
        %v640 = vrot.slane %v625, %v639
        %v641 = vlaneseq
        %v642 = vshrl.u32 %v641, 7
        %v643 = vsub.s32 2, %v642
        %v644 = vrot.slane %v629, %v643
        %v645 = vmul.f32 %v616, %v636
        %v646 = vmul.f32 %v616, %v640
        %v647 = vmul.f32 %v616, %v644
        %v648 = vadd.f32 %v611, %v645
        %v649 = vadd.f32 %v612, %v646
        %v650 = vadd.f32 %v613, %v647
        %651 = vset.pattern.permute.xlu0 3
        %652 = vperm.xlu0 %651, %v536
        %v653 = vpop.permute.xlu0 %652
        %v655 = vlaneseq
        %v656 = vshrl.u32 %v655, 7
        %v657 = vsub.s32 3, %v656
        %v658 = vrot.slane %v534, %v657
        %v659 = vlaneseq
        %v660 = vshrl.u32 %v659, 7
        %v661 = vsub.s32 7, %v660
        %v662 = vrot.slane %v534, %v661
        %v663 = vlaneseq
        %v664 = vshrl.u32 %v663, 7
        %v665 = vsub.s32 3, %v664
        %v666 = vrot.slane %v535, %v665
        %v670 = vlaneseq
        %v671 = vshrl.u32 %v670, 7
        %v672 = vsub.s32 3, %v671
        %v673 = vrot.slane %v658, %v672
        %v674 = vlaneseq
        %v675 = vshrl.u32 %v674, 7
        %v676 = vsub.s32 3, %v675
        %v677 = vrot.slane %v662, %v676
        %v678 = vlaneseq
        %v679 = vshrl.u32 %v678, 7
        %v680 = vsub.s32 3, %v679
        %v681 = vrot.slane %v666, %v680
        %v682 = vmul.f32 %v653, %v673
        %v683 = vmul.f32 %v653, %v677
        %v684 = vmul.f32 %v653, %v681
        %v685 = vadd.f32 %v648, %v682
        %v686 = vadd.f32 %v649, %v683
        %v687 = vadd.f32 %v650, %v684
        %688 = vst [vmem:[%s199] sm:$0xff] %v685
        %689 = vst [vmem:[%s199 + $0x8] sm:$0xff] %v686
        %690 = vst.msk [vmem:[%s199 + $0x10] sm:$0xff] %vm523, %v687
        %s691 = sand.u32 %s103, 1
        %s692 = scalar_lea.sflag [#allocation5], %s691
        %s693 = sand.u32 %s103, 1
        %s694 = smul.addr %s693, 24
        %s695 = scalar_lea.vmem [#allocation4], %s694
        %s696 = sand.u32 %s129, 1
        %s697 = scalar_lea.sflag [#allocation7], %s696
        %s698 = sand.u32 %s129, 1
        %s699 = smul.addr %s698, 24
        %s700 = scalar_lea.vmem [#allocation6], %s699
        // Predicated region
        $region33: #{tpu_custom_call.1} parent=31 // pred_check
          %p701 = pneg %p113
        $region34: #{tpu_custom_call.1} parent=31 // pred_check_branch
          %703 = sbr.rel (%p701) target = $region36
        $region35: #{tpu_custom_call.1} parent=31 // pred_region
          %s705 = ssub.s32 384, 384
          %706 = vsyncadd %s692, %s705
          %s707 = smul.addr %s27, 3
          %s708 = smul.addr %s707, 128
          %s709 = scalar_lea.hbm %s4, %s708
          %s711 = sshll.u32 %s695, 4
          %s712 = int_to_ptr.vmem [resolvable:$true] %s711
          %714 = dma.vmem_to_hbm [thread:$0]  %s712, 384, %s709, %s692
        $region36: #{tpu_custom_call.1} parent=31 // pred_fallthru
          _
        // Predicated region
        $region37: #{tpu_custom_call.1} parent=31 // pred_check
          %p715 = pneg %p139
        $region38: #{tpu_custom_call.1} parent=31 // pred_check_branch
          %717 = sbr.rel (%p715) target = $region40
        $region39: #{tpu_custom_call.1} parent=31 // pred_region
          %s719 = ssub.s32 384, 384
          %720 = vsyncadd %s697, %s719
          %s721 = smul.addr %s27, 3
          %s722 = smul.addr %s721, 128
          %s723 = scalar_lea.hbm %s5, %s722
          %s725 = sshll.u32 %s700, 4
          %s726 = int_to_ptr.vmem [resolvable:$true] %s725
          %728 = dma.vmem_to_hbm [thread:$0]  %s726, 384, %s723, %s697
        $region40: #{tpu_custom_call.1} parent=31 // pred_fallthru
          _
      $region32: #{tpu_custom_call.1} parent=5 // pred_fallthru
        _
      %p729 = scmp.le.s32.totalorder 2, %s22
      // Predicated region
      $region41: #{tpu_custom_call.1} parent=5 // pred_check
        %p730 = pneg %p729
      $region42: #{tpu_custom_call.1} parent=5 // pred_check_branch
        %732 = sbr.rel (%p730) target = $region44
      $region43: #{tpu_custom_call.1} parent=5 // pred_region
        %s733 = ssub.s32 %s22, 2
        // Predicated region
        $region45: #{tpu_custom_call.1} parent=43 // pred_check
          %p734 = pneg %p119
        $region46: #{tpu_custom_call.1} parent=43 // pred_check_branch
          %736 = sbr.rel (%p734) target = $region48
        $region47: #{tpu_custom_call.1} parent=43 // pred_region
          %s737 = sand.u32 %s104, 1
          %s738 = scalar_lea.sflag [#allocation5], %s737
          %s739 = sand.u32 %s104, 1
          %s740 = smul.addr %s739, 24
          %s741 = scalar_lea.vmem [#allocation4], %s740
          %742 = dma.done %s738, 384
        $region48: #{tpu_custom_call.1} parent=43 // pred_fallthru
          _
        // Predicated region
        $region49: #{tpu_custom_call.1} parent=43 // pred_check
          %p743 = pneg %p145
        $region50: #{tpu_custom_call.1} parent=43 // pred_check_branch
          %745 = sbr.rel (%p743) target = $region52
        $region51: #{tpu_custom_call.1} parent=43 // pred_region
          %s746 = sand.u32 %s130, 1
          %s747 = scalar_lea.sflag [#allocation7], %s746
          %s748 = sand.u32 %s130, 1
          %s749 = smul.addr %s748, 24
          %s750 = scalar_lea.vmem [#allocation6], %s749
          %751 = dma.done %s747, 384
        $region52: #{tpu_custom_call.1} parent=43 // pred_fallthru
          _
      $region44: #{tpu_custom_call.1} parent=5 // pred_fallthru
        _
    $region6: #{tpu_custom_call.1} parent=1 // loop_footer
      %s26 = sadd.s32 1, %s22
    $region7: #{tpu_custom_call.1} parent=1 // loop_footer_branch
      %21 = sbr.rel target = $region3
    $region8: #{tpu_custom_call.1} parent=1 // loop_exit
      _
    %752 = vsyncpa [#allocation5], 1
    %s753 = scalar_lea.sflag [#allocation5], 1
    %754 = vsyncpa %s753, 1
    %755 = vsyncpa [#allocation7], 1
    %s756 = scalar_lea.sflag [#allocation7], 1
    %757 = vsyncpa %s756, 1

// kernel: tpu_custom_call.1
$region0: #{tpu_custom_call.1}
  #allocation0 [shape = 'u32[]', space=smem, size = 0x4, offset = 0x4, fixed_abs, tag = 'smem constant byte address 0x4 - core index']
  #allocation1 [shape = 'u32[144,128]{1,0:T(1,128)}', space=vmem, size = 0x12000, scoped, tag = 'internal scratch']
  %s0 = inlined_call_operand.hbm [shape: f32[2,4,324], index: 0, kind: input, shape index: {}]
  %s1 = inlined_call_operand.vmem [shape: f32[8,4], index: 1, kind: input, shape index: {}]
  %s2 = inlined_call_operand.vmem [shape: f32[8,1], index: 2, kind: input, shape index: {}]
  %s3 = inlined_call_operand.hbm [shape: f32[2,8,324], index: 3, kind: input, shape index: {}]
  %s4 = inlined_call_operand.hbm [shape: f32[2,8,324], index: 4, kind: output, shape index: {}]
  %s5 = sld [smem:[#allocation0]]
  $region57: #{tpu_custom_call.1} parent=0
    _
  %s7 = ssub.s32 1, %s5
  %s8 = scalar_select 0, %s7, %s5
  $region1: #{tpu_custom_call.1} parent=0
    #allocation2 [shape = 'u8[12288]{0}', space=vmem, size = 0x3000, scoped, tag = 'input window, operand 0']
    #allocation3 [shape = 's32[2]{0}', space=sflag, size = 0x8, scoped, tag = 'scoped memory for tpu_custom_call.1']
    #allocation4 [shape = 's32[2]{0}', space=sflag, size = 0x8, scoped, tag = 'scoped memory for tpu_custom_call.1']
    #allocation5 [shape = 'u8[24576]{0}', space=vmem, size = 0x6000, scoped, tag = 'input window, operand 3']
    #allocation6 [shape = 's32[2]{0}', space=sflag, size = 0x8, scoped, tag = 'scoped memory for tpu_custom_call.1']
    #allocation7 [shape = 'u8[24576]{0}', space=vmem, size = 0x6000, scoped, tag = 'output window, operand 0']
    %9 = vsyncpa [#allocation3], 0
    %s10 = scalar_lea.sflag [#allocation3], 1
    %11 = vsyncpa %s10, 0
    %12 = vsyncpa [#allocation6], 0
    %s13 = scalar_lea.sflag [#allocation6], 1
    %14 = vsyncpa %s13, 0
    %15 = vsyncpa [#allocation4], 0
    %s16 = scalar_lea.sflag [#allocation4], 1
    %17 = vsyncpa %s16, 0
    loop: start=0, step=1, limit=4
    $region2: #{tpu_custom_call.1} parent=1 // loop_pre_header
      _
    $region3: #{tpu_custom_call.1} parent=1 // loop_header
      %s19 = sphi 0, %s23
      %p20 = scmp.ge.s32.totalorder %s19, 4
      %s29 = sphi 0, %s31
      %s32 = sphi 0, %s29
      %s33 = sphi 0, %s32
      %s49 = sphi 0, %s33
      %s53 = sphi 0, %s53
      %s55 = sphi 0, %s53
      %s56 = sphi 0, %s55
      %s70 = sphi 0, %s56
      %s74 = sphi 0, %s74
      %s76 = sphi 0, %s74
      %s77 = sphi 0, %s76
      %s91 = sphi 0, %s77
      %s97 = sphi 0, %s99
      %s100 = sphi 0, %s97
      %s101 = sphi 0, %s100
      %s117 = sphi 0, %s101
      %s123 = sphi 0, %s125
      %s126 = sphi 0, %s123
      %s127 = sphi 0, %s126
      %s143 = sphi 0, %s127
    $region4: #{tpu_custom_call.1} parent=1 // loop_header_branch
      %22 = sbr.rel (%p20) target = $region8
    $region5: #{tpu_custom_call.1} parent=1 // loop_body
      %s24 = ssub.s32 %s19, 1
      %s25 = ssub.s32 %s19, 2
      %s26 = sadd.s32 %s19, 1
      %s27 = ssub.s32 %s19, %s26
      %p28 = scmp.eq.s32.totalorder %s27, 0
      %s30 = sadd.s32 %s29, 1
      %s31 = scalar_select %p28, %s29, %s30
      %p34 = pneg %p28
      %p35 = scmp.eq.s32.totalorder %s19, 1
      %p36 = por %p34, %p35
      %p37 = scmp.ne.s32.totalorder %s29, %s32
      %p38 = scmp.eq.s32.totalorder %s19, 0
      %p39 = por %p37, %p38
      %p40 = scmp.ne.s32.totalorder %s29, %s32
      %p41 = scmp.eq.s32.totalorder %s24, 1
      %p42 = por %p40, %p41
      %p43 = scmp.ne.s32.totalorder %s32, %s33
      %p44 = scmp.eq.s32.totalorder %s24, 0
      %p45 = por %p43, %p44
      %p46 = scmp.ne.s32.totalorder %s32, %s33
      %p47 = scmp.eq.s32.totalorder %s25, 1
      %p48 = por %p46, %p47
      %p50 = scmp.ne.s32.totalorder %s33, %s49
      %p51 = scmp.eq.s32.totalorder %s25, 0
      %p52 = por %p50, %p51
      %s54 = sadd.s32 %s53, 1
      %p57 = scmp.eq.s32.totalorder %s19, 1
      %p58 = scmp.ne.s32.totalorder %s53, %s55
      %p59 = scmp.eq.s32.totalorder %s19, 0
      %p60 = por %p58, %p59
      %p61 = scmp.ne.s32.totalorder %s53, %s55
      %p62 = scmp.eq.s32.totalorder %s24, 1
      %p63 = por %p61, %p62
      %p64 = scmp.ne.s32.totalorder %s55, %s56
      %p65 = scmp.eq.s32.totalorder %s24, 0
      %p66 = por %p64, %p65
      %p67 = scmp.ne.s32.totalorder %s55, %s56
      %p68 = scmp.eq.s32.totalorder %s25, 1
      %p69 = por %p67, %p68
      %p71 = scmp.ne.s32.totalorder %s56, %s70
      %p72 = scmp.eq.s32.totalorder %s25, 0
      %p73 = por %p71, %p72
      %s75 = sadd.s32 %s74, 1
      %p78 = scmp.eq.s32.totalorder %s19, 1
      %p79 = scmp.ne.s32.totalorder %s74, %s76
      %p80 = scmp.eq.s32.totalorder %s19, 0
      %p81 = por %p79, %p80
      %p82 = scmp.ne.s32.totalorder %s74, %s76
      %p83 = scmp.eq.s32.totalorder %s24, 1
      %p84 = por %p82, %p83
      %p85 = scmp.ne.s32.totalorder %s76, %s77
      %p86 = scmp.eq.s32.totalorder %s24, 0
      %p87 = por %p85, %p86
      %p88 = scmp.ne.s32.totalorder %s76, %s77
      %p89 = scmp.eq.s32.totalorder %s25, 1
      %p90 = por %p88, %p89
      %p92 = scmp.ne.s32.totalorder %s77, %s91
      %p93 = scmp.eq.s32.totalorder %s25, 0
      %p94 = por %p92, %p93
      %s95 = ssub.s32 %s19, %s26
      %p96 = scmp.eq.s32.totalorder %s95, 0
      %s98 = sadd.s32 %s97, 1
      %s99 = scalar_select %p96, %s97, %s98
      %p102 = pneg %p96
      %p103 = scmp.eq.s32.totalorder %s19, 1
      %p104 = por %p102, %p103
      %p105 = scmp.ne.s32.totalorder %s97, %s100
      %p106 = scmp.eq.s32.totalorder %s19, 0
      %p107 = por %p105, %p106
      %p108 = scmp.ne.s32.totalorder %s97, %s100
      %p109 = scmp.eq.s32.totalorder %s24, 1
      %p110 = por %p108, %p109
      %p111 = scmp.ne.s32.totalorder %s100, %s101
      %p112 = scmp.eq.s32.totalorder %s24, 0
      %p113 = por %p111, %p112
      %p114 = scmp.ne.s32.totalorder %s100, %s101
      %p115 = scmp.eq.s32.totalorder %s25, 1
      %p116 = por %p114, %p115
      %p118 = scmp.ne.s32.totalorder %s101, %s117
      %p119 = scmp.eq.s32.totalorder %s25, 0
      %p120 = por %p118, %p119
      %s121 = ssub.s32 %s19, %s26
      %p122 = scmp.eq.s32.totalorder %s121, 0
      %s124 = sadd.s32 %s123, 1
      %s125 = scalar_select %p122, %s123, %s124
      %p128 = pneg %p122
      %p129 = scmp.eq.s32.totalorder %s19, 1
      %p130 = por %p128, %p129
      %p131 = scmp.ne.s32.totalorder %s123, %s126
      %p132 = scmp.eq.s32.totalorder %s19, 0
      %p133 = por %p131, %p132
      %p134 = scmp.ne.s32.totalorder %s123, %s126
      %p135 = scmp.eq.s32.totalorder %s24, 1
      %p136 = por %p134, %p135
      %p137 = scmp.ne.s32.totalorder %s126, %s127
      %p138 = scmp.eq.s32.totalorder %s24, 0
      %p139 = por %p137, %p138
      %p140 = scmp.ne.s32.totalorder %s126, %s127
      %p141 = scmp.eq.s32.totalorder %s25, 1
      %p142 = por %p140, %p141
      %p144 = scmp.ne.s32.totalorder %s127, %s143
      %p145 = scmp.eq.s32.totalorder %s25, 0
      %p146 = por %p144, %p145
      %p147 = scmp.le.s32.totalorder 1, %s19
      %p148 = scmp.lt.s32.totalorder %s19, 3
      %p149 = pnand %p147, %p148
      %p150 = pneg %p149
      // Predicated region
      $region9: #{tpu_custom_call.1} parent=5 // pred_check
        _
      $region10: #{tpu_custom_call.1} parent=5 // pred_check_branch
        %152 = sbr.rel (%p149) target = $region12
      $region11: #{tpu_custom_call.1} parent=5 // pred_region
        %s153 = ssub.s32 %s19, 1
        // Predicated region
        $region13: #{tpu_custom_call.1} parent=11 // pred_check
          %p154 = pneg %p66
        $region14: #{tpu_custom_call.1} parent=11 // pred_check_branch
          %156 = sbr.rel (%p154) target = $region16
        $region15: #{tpu_custom_call.1} parent=11 // pred_region
          _
        $region16: #{tpu_custom_call.1} parent=11 // pred_fallthru
          _
        // Predicated region
        $region17: #{tpu_custom_call.1} parent=11 // pred_check
          %p157 = pneg %p87
        $region18: #{tpu_custom_call.1} parent=11 // pred_check_branch
          %159 = sbr.rel (%p157) target = $region20
        $region19: #{tpu_custom_call.1} parent=11 // pred_region
          _
        $region20: #{tpu_custom_call.1} parent=11 // pred_fallthru
          _
      $region12: #{tpu_custom_call.1} parent=5 // pred_fallthru
        _
      %p160 = scmp.lt.s32.totalorder %s19, 2
      // Predicated region
      $region21: #{tpu_custom_call.1} parent=5 // pred_check
        %p161 = pneg %p160
      $region22: #{tpu_custom_call.1} parent=5 // pred_check_branch
        %163 = sbr.rel (%p161) target = $region24
      $region23: #{tpu_custom_call.1} parent=5 // pred_region
        // Predicated region
        $region25: #{tpu_custom_call.1} parent=23 // pred_check
          %p164 = pneg %p39
        $region26: #{tpu_custom_call.1} parent=23 // pred_check_branch
          %166 = sbr.rel (%p164) target = $region28
        $region27: #{tpu_custom_call.1} parent=23 // pred_region
          %s167 = sand.u32 %s29, 1
          %s168 = scalar_lea.sflag [#allocation3], %s167
          %s169 = sand.u32 %s29, 1
          %s170 = smul.addr %s169, 12
          %s171 = scalar_lea.vmem [#allocation2], %s170
          %s173 = ssub.s32 192, 192
          %174 = vsyncadd %s168, %s173
          %s175 = smul.addr %s19, 3
          %s176 = smul.addr %s175, 64
          %s177 = scalar_lea.hbm %s0, %s176
          %s179 = sshll.u32 %s171, 4
          %s180 = int_to_ptr.vmem [resolvable:$true] %s179
          %182 = dma.hbm_to_vmem [thread:$0]  %s177, 192, %s180, %s168
        $region28: #{tpu_custom_call.1} parent=23 // pred_fallthru
          _
        // Predicated region
        $region29: #{tpu_custom_call.1} parent=23 // pred_check
          %p183 = pneg %p107
        $region30: #{tpu_custom_call.1} parent=23 // pred_check_branch
          %185 = sbr.rel (%p183) target = $region32
        $region31: #{tpu_custom_call.1} parent=23 // pred_region
          %s186 = sand.u32 %s97, 1
          %s187 = scalar_lea.sflag [#allocation6], %s186
          %s188 = sand.u32 %s97, 1
          %s189 = smul.addr %s188, 24
          %s190 = scalar_lea.vmem [#allocation5], %s189
          %s192 = ssub.s32 384, 384
          %193 = vsyncadd %s187, %s192
          %s194 = smul.addr %s19, 3
          %s195 = smul.addr %s194, 128
          %s196 = scalar_lea.hbm %s3, %s195
          %s198 = sshll.u32 %s190, 4
          %s199 = int_to_ptr.vmem [resolvable:$true] %s198
          %201 = dma.hbm_to_vmem [thread:$0]  %s196, 384, %s199, %s187
        $region32: #{tpu_custom_call.1} parent=23 // pred_fallthru
          _
      $region24: #{tpu_custom_call.1} parent=5 // pred_fallthru
        _
      %p202 = scmp.le.s32.totalorder 1, %s19
      %p203 = scmp.lt.s32.totalorder %s19, 3
      %p204 = pnand %p202, %p203
      %p205 = pneg %p204
      // Predicated region
      $region33: #{tpu_custom_call.1} parent=5 // pred_check
        _
      $region34: #{tpu_custom_call.1} parent=5 // pred_check_branch
        %207 = sbr.rel (%p204) target = $region36
      $region35: #{tpu_custom_call.1} parent=5 // pred_region
        %s208 = ssub.s32 %s19, 1
        %s209 = sand.u32 %s32, 1
        %s210 = scalar_lea.sflag [#allocation3], %s209
        %s211 = sand.u32 %s32, 1
        %s212 = smul.addr %s211, 12
        %s213 = scalar_lea.vmem [#allocation2], %s212
        // Predicated region
        $region37: #{tpu_custom_call.1} parent=35 // pred_check
          %p214 = pneg %p45
        $region38: #{tpu_custom_call.1} parent=35 // pred_check_branch
          %216 = sbr.rel (%p214) target = $region40
        $region39: #{tpu_custom_call.1} parent=35 // pred_region
          %217 = dma.done %s210, 192
        $region40: #{tpu_custom_call.1} parent=35 // pred_fallthru
          _
        %s218 = sand.u32 %s100, 1
        %s219 = scalar_lea.sflag [#allocation6], %s218
        %s220 = sand.u32 %s100, 1
        %s221 = smul.addr %s220, 24
        %s222 = scalar_lea.vmem [#allocation5], %s221
        // Predicated region
        $region41: #{tpu_custom_call.1} parent=35 // pred_check
          %p223 = pneg %p113
        $region42: #{tpu_custom_call.1} parent=35 // pred_check_branch
          %225 = sbr.rel (%p223) target = $region44
        $region43: #{tpu_custom_call.1} parent=35 // pred_region
          %226 = dma.done %s219, 384
        $region44: #{tpu_custom_call.1} parent=35 // pred_fallthru
          _
        %s227 = sand.u32 %s32, 1
        %s228 = scalar_lea.sflag [#allocation3], %s227
        %s229 = sand.u32 %s32, 1
        %s230 = smul.addr %s229, 12
        %s231 = scalar_lea.vmem [#allocation2], %s230
        %p232 = pneg %p45
        %p233 = pneg %p42
        %p234 = pneg %p66
        %p235 = pneg %p63
        %p236 = pneg %p87
        %p237 = pneg %p84
        %s238 = sand.u32 %s100, 1
        %s239 = scalar_lea.sflag [#allocation6], %s238
        %s240 = sand.u32 %s100, 1
        %s241 = smul.addr %s240, 24
        %s242 = scalar_lea.vmem [#allocation5], %s241
        %p243 = pneg %p113
        %p244 = pneg %p110
        %p245 = pneg %p139
        %p246 = pneg %p136
        %s247 = sand.u32 %s126, 1
        %s248 = scalar_lea.sflag [#allocation4], %s247
        %s249 = sand.u32 %s126, 1
        %s250 = smul.addr %s249, 24
        %s251 = scalar_lea.vmem [#allocation7], %s250
        %v252 = vld [vmem:[%s222] sm:$0xff]
        %v253 = vld [vmem:[%s222 + $0x8] sm:$0xff]
        %v254 = vld [vmem:[%s222 + $0x10] sm:$0xff]
        %v255 = vld [vmem:[%s2] sm:$0xff]
        %257 = vset.pattern.permute.xlu0 0
        %258 = vperm.xlu0 %257, %v255
        %v259 = vpop.permute.xlu0 %258
        %v261 = vadd.f32 %v252, %v259
        %v262 = vadd.f32 %v253, %v259
        %v263 = vadd.f32 %v254, %v259
        %v264 = vld [vmem:[%s213] sm:$0xff]
        %v265 = vld [vmem:[%s213 + $0x8] sm:$0xf]
        %v266 = vld [vmem:[%s1] sm:$0xff]
        %268 = vset.pattern.permute.xlu0 0
        %269 = vperm.xlu0 %268, %v266
        %v270 = vpop.permute.xlu0 %269
        %v274 = vlaneseq
        %v275 = vshrl.u32 %v274, 7
        %v276 = vsub.s32 0, %v275
        %v277 = vrot.slane %v264, %v276
        %v278 = vlaneseq
        %v279 = vshrl.u32 %v278, 7
        %v280 = vsub.s32 4, %v279
        %v281 = vrot.slane %v264, %v280
        %v282 = vlaneseq
        %v283 = vshrl.u32 %v282, 7
        %v284 = vsub.s32 0, %v283
        %v285 = vrot.slane %v265, %v284
        %v289 = vlaneseq
        %v290 = vshrl.u32 %v289, 7
        %v291 = vsub.s32 0, %v290
        %v292 = vrot.slane %v277, %v291
        %v293 = vlaneseq
        %v294 = vshrl.u32 %v293, 7
        %v295 = vsub.s32 0, %v294
        %v296 = vrot.slane %v281, %v295
        %v297 = vlaneseq
        %v298 = vshrl.u32 %v297, 7
        %v299 = vsub.s32 0, %v298
        %v300 = vrot.slane %v285, %v299
        %v301 = vmul.f32 %v270, %v292
        %v302 = vmul.f32 %v270, %v296
        %v303 = vmul.f32 %v270, %v300
        %v304 = vadd.f32 %v261, %v301
        %v305 = vadd.f32 %v262, %v302
        %v306 = vadd.f32 %v263, %v303
        %307 = vset.pattern.permute.xlu0 1
        %308 = vperm.xlu0 %307, %v266
        %v309 = vpop.permute.xlu0 %308
        %v311 = vlaneseq
        %v312 = vshrl.u32 %v311, 7
        %v313 = vsub.s32 1, %v312
        %v314 = vrot.slane %v264, %v313
        %v315 = vlaneseq
        %v316 = vshrl.u32 %v315, 7
        %v317 = vsub.s32 5, %v316
        %v318 = vrot.slane %v264, %v317
        %v319 = vlaneseq
        %v320 = vshrl.u32 %v319, 7
        %v321 = vsub.s32 1, %v320
        %v322 = vrot.slane %v265, %v321
        %v326 = vlaneseq
        %v327 = vshrl.u32 %v326, 7
        %v328 = vsub.s32 1, %v327
        %v329 = vrot.slane %v314, %v328
        %v330 = vlaneseq
        %v331 = vshrl.u32 %v330, 7
        %v332 = vsub.s32 1, %v331
        %v333 = vrot.slane %v318, %v332
        %v334 = vlaneseq
        %v335 = vshrl.u32 %v334, 7
        %v336 = vsub.s32 1, %v335
        %v337 = vrot.slane %v322, %v336
        %v338 = vmul.f32 %v309, %v329
        %v339 = vmul.f32 %v309, %v333
        %v340 = vmul.f32 %v309, %v337
        %v341 = vadd.f32 %v304, %v338
        %v342 = vadd.f32 %v305, %v339
        %v343 = vadd.f32 %v306, %v340
        %344 = vset.pattern.permute.xlu0 2
        %345 = vperm.xlu0 %344, %v266
        %v346 = vpop.permute.xlu0 %345
        %v348 = vlaneseq
        %v349 = vshrl.u32 %v348, 7
        %v350 = vsub.s32 2, %v349
        %v351 = vrot.slane %v264, %v350
        %v352 = vlaneseq
        %v353 = vshrl.u32 %v352, 7
        %v354 = vsub.s32 6, %v353
        %v355 = vrot.slane %v264, %v354
        %v356 = vlaneseq
        %v357 = vshrl.u32 %v356, 7
        %v358 = vsub.s32 2, %v357
        %v359 = vrot.slane %v265, %v358
        %v363 = vlaneseq
        %v364 = vshrl.u32 %v363, 7
        %v365 = vsub.s32 2, %v364
        %v366 = vrot.slane %v351, %v365
        %v367 = vlaneseq
        %v368 = vshrl.u32 %v367, 7
        %v369 = vsub.s32 2, %v368
        %v370 = vrot.slane %v355, %v369
        %v371 = vlaneseq
        %v372 = vshrl.u32 %v371, 7
        %v373 = vsub.s32 2, %v372
        %v374 = vrot.slane %v359, %v373
        %v375 = vmul.f32 %v346, %v366
        %v376 = vmul.f32 %v346, %v370
        %v377 = vmul.f32 %v346, %v374
        %v378 = vadd.f32 %v341, %v375
        %v379 = vadd.f32 %v342, %v376
        %v380 = vadd.f32 %v343, %v377
        %381 = vset.pattern.permute.xlu0 3
        %382 = vperm.xlu0 %381, %v266
        %v383 = vpop.permute.xlu0 %382
        %v385 = vlaneseq
        %v386 = vshrl.u32 %v385, 7
        %v387 = vsub.s32 3, %v386
        %v388 = vrot.slane %v264, %v387
        %v389 = vlaneseq
        %v390 = vshrl.u32 %v389, 7
        %v391 = vsub.s32 7, %v390
        %v392 = vrot.slane %v264, %v391
        %v393 = vlaneseq
        %v394 = vshrl.u32 %v393, 7
        %v395 = vsub.s32 3, %v394
        %v396 = vrot.slane %v265, %v395
        %v400 = vlaneseq
        %v401 = vshrl.u32 %v400, 7
        %v402 = vsub.s32 3, %v401
        %v403 = vrot.slane %v388, %v402
        %v404 = vlaneseq
        %v405 = vshrl.u32 %v404, 7
        %v406 = vsub.s32 3, %v405
        %v407 = vrot.slane %v392, %v406
        %v408 = vlaneseq
        %v409 = vshrl.u32 %v408, 7
        %v410 = vsub.s32 3, %v409
        %v411 = vrot.slane %v396, %v410
        %v412 = vmul.f32 %v383, %v403
        %v413 = vmul.f32 %v383, %v407
        %v414 = vmul.f32 %v383, %v411
        %v415 = vadd.f32 %v378, %v412
        %v416 = vadd.f32 %v379, %v413
        %v417 = vadd.f32 %v380, %v414
        %418 = vst [vmem:[%s251] sm:$0xff] %v415
        %419 = vst [vmem:[%s251 + $0x8] sm:$0xff] %v416
        %vm420 = vcmask 556032
        %421 = vst.msk [vmem:[%s251 + $0x10] sm:$0xff] %vm420, %v417
        %s422 = sand.u32 %s126, 1
        %s423 = scalar_lea.sflag [#allocation4], %s422
        %s424 = sand.u32 %s126, 1
        %s425 = smul.addr %s424, 24
        %s426 = scalar_lea.vmem [#allocation7], %s425
        // Predicated region
        $region45: #{tpu_custom_call.1} parent=35 // pred_check
          %p427 = pneg %p136
        $region46: #{tpu_custom_call.1} parent=35 // pred_check_branch
          %429 = sbr.rel (%p427) target = $region48
        $region47: #{tpu_custom_call.1} parent=35 // pred_region
          %s431 = ssub.s32 384, 384
          %432 = vsyncadd %s423, %s431
          %s433 = smul.addr %s24, 3
          %s434 = smul.addr %s433, 128
          %s435 = scalar_lea.hbm %s4, %s434
          %s437 = sshll.u32 %s426, 4
          %s438 = int_to_ptr.vmem [resolvable:$true] %s437
          %440 = dma.vmem_to_hbm [thread:$0]  %s438, 384, %s435, %s423
        $region48: #{tpu_custom_call.1} parent=35 // pred_fallthru
          _
      $region36: #{tpu_custom_call.1} parent=5 // pred_fallthru
        _
      %p441 = scmp.le.s32.totalorder 2, %s19
      // Predicated region
      $region49: #{tpu_custom_call.1} parent=5 // pred_check
        %p442 = pneg %p441
      $region50: #{tpu_custom_call.1} parent=5 // pred_check_branch
        %444 = sbr.rel (%p442) target = $region52
      $region51: #{tpu_custom_call.1} parent=5 // pred_region
        %s445 = ssub.s32 %s19, 2
        // Predicated region
        $region53: #{tpu_custom_call.1} parent=51 // pred_check
          %p446 = pneg %p142
        $region54: #{tpu_custom_call.1} parent=51 // pred_check_branch
          %448 = sbr.rel (%p446) target = $region56
        $region55: #{tpu_custom_call.1} parent=51 // pred_region
          %s449 = sand.u32 %s127, 1
          %s450 = scalar_lea.sflag [#allocation4], %s449
          %s451 = sand.u32 %s127, 1
          %s452 = smul.addr %s451, 24
          %s453 = scalar_lea.vmem [#allocation7], %s452
          %454 = dma.done %s450, 384
        $region56: #{tpu_custom_call.1} parent=51 // pred_fallthru
          _
      $region52: #{tpu_custom_call.1} parent=5 // pred_fallthru
        _
    $region6: #{tpu_custom_call.1} parent=1 // loop_footer
      %s23 = sadd.s32 1, %s19
    $region7: #{tpu_custom_call.1} parent=1 // loop_footer_branch
      %18 = sbr.rel target = $region3
    $region8: #{tpu_custom_call.1} parent=1 // loop_exit
      _
    %455 = vsyncpa [#allocation3], 1
    %s456 = scalar_lea.sflag [#allocation3], 1
    %457 = vsyncpa %s456, 1
    %458 = vsyncpa [#allocation6], 1
    %s459 = scalar_lea.sflag [#allocation6], 1
    %460 = vsyncpa %s459, 1
    %461 = vsyncpa [#allocation4], 1
    %s462 = scalar_lea.sflag [#allocation4], 1
    %463 = vsyncpa %s462, 1

</llo_original>
